<compile_context>
chip_gen: v6e
topology: v6e:2x2x1
jax: 0.10.0
libtpu: 0.0.40
codegen_flags: <defaults>
</compile_context>

<pallas_src>
import functools

import jax
import jax.numpy as jnp
import numpy as np
from jax.experimental import pallas as pl
from jax.experimental.pallas import tpu as pltpu


def position_attention_kernel(x_ref, mask_ref, w3_ref, b3_ref,
                              wsqmin_ref, wsqmax_ref, bsq_ref,
                              wex_ref, bex_ref, w1_ref, b1_ref,
                              out_ref, patch_ref, *, W):
    """One batch element. x_ref: (1, C, HW); channels on sublanes, HW on lanes."""
    C = x_ref.shape[1]
    HW = x_ref.shape[2]
    mm_dtype = w3_ref.dtype                      # matmul/storage dtype (f32 or bf16)

    xf = x_ref[0].astype(jnp.float32)            # (C, HW) f32 for shifts + gating

    # ---- build the 9-tap im2col patch (9C, HW) in VMEM scratch ---------------
    # tap k = kh*3 + kw reads x[h + kh - 1, w + kw - 1]; in the flattened layout
    # that is a rotate by -(dh*W + dw) along the lane axis, with out-of-bounds
    # positions zeroed by the precomputed per-tap edge mask.
    for kh in range(3):
        for kw in range(3):
            k = kh * 3 + kw
            off = (kh - 1) * W + (kw - 1)
            if off == 0:
                shifted = xf
            else:
                shifted = pltpu.roll(xf, shift=(-off) % HW, axis=1)
                shifted = shifted * mask_ref[pl.ds(k, 1), :]      # (1, HW) edge mask
            patch_ref[pl.ds(k * C, C), :] = shifted

    patch = patch_ref[...]                                         # (9C, HW) f32

    # ---- conv_in: ONE (C, 9C) x (9C, HW) MXU contraction ---------------------
    conv = jnp.dot(w3_ref[...], patch.astype(mm_dtype),
                   preferred_element_type=jnp.float32) + b3_ref[...]   # (C, HW)

    pos = jnp.maximum(conv, 0.0)                 # relu branch
    x_min = 0.5 * (conv - jnp.abs(conv))         # negative branch (computed once, reused)

    # ---- conv_out pos-branch: independent of the squeeze/excite chain --------
    conv1_pos = jnp.dot(w1_ref[...], pos.astype(mm_dtype),
                        preferred_element_type=jnp.float32)             # (C, HW)

    # ---- APReLU squeeze / excite (tiny (C,1) chain, off the MXU critical path)
    gap_min = jnp.mean(x_min, axis=1, keepdims=True)                    # (C, 1)
    gap_max = jnp.mean(pos, axis=1, keepdims=True)                      # (C, 1)
    squeeze = (jnp.dot(wsqmin_ref[...], gap_min, preferred_element_type=jnp.float32)
               + jnp.dot(wsqmax_ref[...], gap_max, preferred_element_type=jnp.float32)
               + bsq_ref[...])
    squeeze = jnp.maximum(squeeze, 0.0)
    excit = jax.nn.sigmoid(
        jnp.dot(wex_ref[...], squeeze, preferred_element_type=jnp.float32)
        + bex_ref[...])                                                 # (C, 1)

    # ---- conv_out neg-branch (needs excit), then sigmoid gate of the input ----
    ap_neg = (excit * x_min).astype(mm_dtype)                           # (C, HW)
    conv1 = (conv1_pos
             + jnp.dot(w1_ref[...], ap_neg, preferred_element_type=jnp.float32)
             + b1_ref[...])
    out_ref[0] = (xf * jax.nn.sigmoid(conv1)).astype(out_ref.dtype)


def position_attention(x_nchw, params, compute_dtype=jnp.float32):
    """x_nchw: (N, C, H, W) f32. compute_dtype: HBM storage / MXU dtype (f32 or bf16)."""
    N, C, H, W = x_nchw.shape
    HW = H * W

    # NCHW -> (N, C, HW): channels on sublanes, HW (multiple of 128) on lanes.
    x_flat = x_nchw.reshape(N, C, HW).astype(compute_dtype)

    # conv_in weight (Cout, Cin, 3, 3) -> (Cout, 9*Cin), tap-major then cin,
    # matching the patch row order written by the kernel (row = k*C + cin).
    w3f = jnp.transpose(params['conv_in_w'], (0, 2, 3, 1)).reshape(C, 9 * C)
    w3f = w3f.astype(compute_dtype)
    b3 = params['conv_in_b'].reshape(C, 1).astype(jnp.float32)
    wsq = params['fc_sq_w'].astype(jnp.float32)                    # (C, 2C)
    wsq_min, wsq_max = wsq[:, :C], wsq[:, C:]
    bsq = params['fc_sq_b'].reshape(C, 1).astype(jnp.float32)
    wex = params['fc_ex_w'].astype(jnp.float32)                    # (C, C)
    bex = params['fc_ex_b'].reshape(C, 1).astype(jnp.float32)
    w1 = params['conv_out_w'].reshape(C, C).astype(compute_dtype)  # (Cout, Cin)
    b1 = params['conv_out_b'].reshape(C, 1).astype(jnp.float32)

    # Per-tap edge validity masks (9, HW): 1.0 where (h+dh, w+dw) is in bounds.
    hh, ww = np.meshgrid(np.arange(H), np.arange(W), indexing='ij')
    tap_masks = []
    for kh in range(3):
        for kw in range(3):
            dh, dw = kh - 1, kw - 1
            valid = ((hh + dh >= 0) & (hh + dh < H)
                     & (ww + dw >= 0) & (ww + dw < W))
            tap_masks.append(valid.reshape(HW))
    tap_mask = jnp.asarray(np.stack(tap_masks).astype(np.float32))     # (9, HW)

    cmap2 = lambda n: (0, 0)
    out = pl.pallas_call(
        functools.partial(position_attention_kernel, W=W),
        out_shape=jax.ShapeDtypeStruct((N, C, HW), jnp.float32),
        grid_spec=pltpu.PrefetchScalarGridSpec(
            num_scalar_prefetch=0,
            grid=(N,),   # for large HW, add an HW-tile axis + cross-tile gap accumulator
            in_specs=[
                pl.BlockSpec((1, C, HW), lambda n: (n, 0, 0)),   # x
                pl.BlockSpec((9, HW), cmap2),                    # tap edge masks
                pl.BlockSpec((C, 9 * C), cmap2),                 # fused 3x3 weight
                pl.BlockSpec((C, 1), cmap2),                     # conv_in bias
                pl.BlockSpec((C, C), cmap2),                     # fc_squeeze (min half)
                pl.BlockSpec((C, C), cmap2),                     # fc_squeeze (max half)
                pl.BlockSpec((C, 1), cmap2),                     # fc_squeeze bias
                pl.BlockSpec((C, C), cmap2),                     # fc_excitation weight
                pl.BlockSpec((C, 1), cmap2),                     # fc_excitation bias
                pl.BlockSpec((C, C), cmap2),                     # conv_out weight
                pl.BlockSpec((C, 1), cmap2),                     # conv_out bias
            ],
            out_specs=pl.BlockSpec((1, C, HW), lambda n: (n, 0, 0)),
            scratch_shapes=[pltpu.VMEM((9 * C, HW), jnp.float32)],
        ),
        compiler_params=pltpu.CompilerParams(
            dimension_semantics=("parallel",),
            vmem_limit_bytes=32 * 1024 * 1024,
        ),
    )(x_flat, tap_mask, w3f, b3, wsq_min, wsq_max, bsq, wex, bex, w1, b1)

    return out.reshape(N, C, H, W)


def reference(x, p):
    # pure-JAX reference mirroring the PyTorch forward (NCHW)
    out = jax.lax.conv_general_dilated(
        x, p['conv_in_w'], (1, 1), ((1, 1), (1, 1)),
        dimension_numbers=('NCHW', 'OIHW', 'NCHW'))
    out = out + p['conv_in_b'][None, :, None, None]
    x_min = (out - jnp.abs(out)) * 0.5
    x_max = jnp.maximum(out, 0.0)
    gmin = jnp.mean(x_min, axis=(2, 3))
    gmax = jnp.mean(x_max, axis=(2, 3))
    cat = jnp.concatenate([gmin, gmax], axis=1)
    sq = jnp.maximum(cat @ p['fc_sq_w'].T + p['fc_sq_b'], 0.0)
    ex = jax.nn.sigmoid(sq @ p['fc_ex_w'].T + p['fc_ex_b'])
    ap = x_max + 0.5 * ex[:, :, None, None] * (out - jnp.abs(out))
    out2 = jax.lax.conv_general_dilated(
        ap, p['conv_out_w'], (1, 1), ((0, 0), (0, 0)),
        dimension_numbers=('NCHW', 'OIHW', 'NCHW'))
    out2 = out2 + p['conv_out_b'][None, :, None, None]
    return x * jax.nn.sigmoid(out2)


if __name__ == "__main__":
    N, C, H, W = 2, 4, 16, 16
    key = jax.random.PRNGKey(0)
    keys = jax.random.split(key, 9)

    x = jax.random.normal(keys[0], (N, C, H, W), dtype=jnp.float32)
    params = {
        'conv_in_w': 0.1 * jax.random.normal(keys[1], (C, C, 3, 3), jnp.float32),
        'conv_in_b': 0.1 * jax.random.normal(keys[2], (C,), jnp.float32),
        'fc_sq_w':   0.1 * jax.random.normal(keys[3], (C, 2 * C), jnp.float32),
        'fc_sq_b':   0.1 * jax.random.normal(keys[4], (C,), jnp.float32),
        'fc_ex_w':   0.1 * jax.random.normal(keys[5], (C, C), jnp.float32),
        'fc_ex_b':   0.1 * jax.random.normal(keys[6], (C,), jnp.float32),
        'conv_out_w': 0.1 * jax.random.normal(keys[7], (C, C, 1, 1), jnp.float32),
        'conv_out_b': 0.1 * jax.random.normal(keys[8], (C,), jnp.float32),
    }

    ref = jax.block_until_ready(reference(x, params))

    # f32 path: tight check against the conv reference.
    out_f32 = jax.block_until_ready(position_attention(x, params, jnp.float32))
    np.testing.assert_allclose(np.asarray(out_f32), np.asarray(ref),
                               rtol=1e-4, atol=1e-5)

    # bf16 storage / MXU path (f32 accumulation + f32 elementwise): relaxed tolerance
    # commensurate with bf16 rounding of x and the conv weights.
    out_bf16 = jax.block_until_ready(position_attention(x, params, jnp.bfloat16))
    np.testing.assert_allclose(np.asarray(out_bf16), np.asarray(ref),
                               rtol=5e-2, atol=5e-2)

    print("KERNEL_OK")
</pallas_src>

<mosaic_0001>
module attributes {stable_mosaic.version = 11 : i64} {
  func.func @position_attention_kernel(%arg0: i32, %arg1: memref<1x4x256xf32, #tpu.memory_space<vmem>>, %arg2: memref<9x256xf32, #tpu.memory_space<vmem>>, %arg3: memref<4x36xf32, #tpu.memory_space<vmem>>, %arg4: memref<4x1xf32, #tpu.memory_space<vmem>>, %arg5: memref<4x4xf32, #tpu.memory_space<vmem>>, %arg6: memref<4x4xf32, #tpu.memory_space<vmem>>, %arg7: memref<4x1xf32, #tpu.memory_space<vmem>>, %arg8: memref<4x4xf32, #tpu.memory_space<vmem>>, %arg9: memref<4x1xf32, #tpu.memory_space<vmem>>, %arg10: memref<4x4xf32, #tpu.memory_space<vmem>>, %arg11: memref<4x1xf32, #tpu.memory_space<vmem>>, %arg12: memref<1x4x256xf32, #tpu.memory_space<vmem>>, %arg13: memref<36x256xf32, #tpu.memory_space<vmem>>) attributes {dimension_semantics = [#tpu.dimension_semantics<parallel>], iteration_bounds = array<i64: 2>, scalar_prefetch = 0 : i64, scratch_operands = 1 : i64, tpu.core_type = #tpu.core_type<tc>, window_params = [{transform_indices = @transform_0, window_bounds = array<i64: 1, 4, 256>}, {pipeline_mode = #tpu.pipeline_mode<synchronous>, transform_indices = @transform_1, window_bounds = array<i64: 9, 256>}, {pipeline_mode = #tpu.pipeline_mode<synchronous>, transform_indices = @transform_2, window_bounds = array<i64: 4, 36>}, {pipeline_mode = #tpu.pipeline_mode<synchronous>, transform_indices = @transform_3, window_bounds = array<i64: 4, 1>}, {pipeline_mode = #tpu.pipeline_mode<synchronous>, transform_indices = @transform_4, window_bounds = array<i64: 4, 4>}, {pipeline_mode = #tpu.pipeline_mode<synchronous>, transform_indices = @transform_5, window_bounds = array<i64: 4, 4>}, {pipeline_mode = #tpu.pipeline_mode<synchronous>, transform_indices = @transform_6, window_bounds = array<i64: 4, 1>}, {pipeline_mode = #tpu.pipeline_mode<synchronous>, transform_indices = @transform_7, window_bounds = array<i64: 4, 4>}, {pipeline_mode = #tpu.pipeline_mode<synchronous>, transform_indices = @transform_8, window_bounds = array<i64: 4, 1>}, {pipeline_mode = #tpu.pipeline_mode<synchronous>, transform_indices = @transform_9, window_bounds = array<i64: 4, 4>}, {pipeline_mode = #tpu.pipeline_mode<synchronous>, transform_indices = @transform_10, window_bounds = array<i64: 4, 1>}, {transform_indices = @transform_11, window_bounds = array<i64: 1, 4, 256>}]} {
    %c0 = arith.constant 0 : index
    %c0_0 = arith.constant 0 : index
    %c0_1 = arith.constant 0 : index
    %0 = vector.load %arg1[%c0, %c0_0, %c0_1] : memref<1x4x256xf32, #tpu.memory_space<vmem>>, vector<1x4x256xf32>
    %1 = vector.shape_cast %0 : vector<1x4x256xf32> to vector<4x256xf32>
    %c17_i32 = arith.constant 17 : i32
    %2 = tpu.dynamic_rotate %1 by %c17_i32 dim 1 : vector<4x256xf32>, i32 -> vector<4x256xf32>
    %c0_2 = arith.constant 0 : index
    %c0_3 = arith.constant 0 : index
    %3 = vector.load %arg2[%c0_2, %c0_3] : memref<9x256xf32, #tpu.memory_space<vmem>>, vector<1x256xf32>
    %4 = vector.broadcast %3 : vector<1x256xf32> to vector<4x256xf32>
    %5 = arith.mulf %2, %4 : vector<4x256xf32>
    %c0_4 = arith.constant 0 : index
    %c0_5 = arith.constant 0 : index
    %6 = vector.load %arg13[%c0_4, %c0_5] : memref<36x256xf32, #tpu.memory_space<vmem>>, vector<4x256xf32>
    tpu.vector_store %arg13[%c0_4, %c0_5], %5 {strides = array<i32>} : memref<36x256xf32, #tpu.memory_space<vmem>>, vector<4x256xf32>,
    %c16_i32 = arith.constant 16 : i32
    %7 = tpu.dynamic_rotate %1 by %c16_i32 dim 1 : vector<4x256xf32>, i32 -> vector<4x256xf32>
    %c1 = arith.constant 1 : index
    %c0_6 = arith.constant 0 : index
    %8 = vector.load %arg2[%c1, %c0_6] : memref<9x256xf32, #tpu.memory_space<vmem>>, vector<1x256xf32>
    %9 = vector.broadcast %8 : vector<1x256xf32> to vector<4x256xf32>
    %10 = arith.mulf %7, %9 : vector<4x256xf32>
    %c4 = arith.constant 4 : index
    %c0_7 = arith.constant 0 : index
    %11 = vector.load %arg13[%c4, %c0_7] : memref<36x256xf32, #tpu.memory_space<vmem>>, vector<4x256xf32>
    tpu.vector_store %arg13[%c4, %c0_7], %10 {strides = array<i32>} : memref<36x256xf32, #tpu.memory_space<vmem>>, vector<4x256xf32>,
    %c15_i32 = arith.constant 15 : i32
    %12 = tpu.dynamic_rotate %1 by %c15_i32 dim 1 : vector<4x256xf32>, i32 -> vector<4x256xf32>
    %c2 = arith.constant 2 : index
    %c0_8 = arith.constant 0 : index
    %13 = vector.load %arg2[%c2, %c0_8] : memref<9x256xf32, #tpu.memory_space<vmem>>, vector<1x256xf32>
    %14 = vector.broadcast %13 : vector<1x256xf32> to vector<4x256xf32>
    %15 = arith.mulf %12, %14 : vector<4x256xf32>
    %c8 = arith.constant 8 : index
    %c0_9 = arith.constant 0 : index
    %16 = vector.load %arg13[%c8, %c0_9] : memref<36x256xf32, #tpu.memory_space<vmem>>, vector<4x256xf32>
    tpu.vector_store %arg13[%c8, %c0_9], %15 {strides = array<i32>} : memref<36x256xf32, #tpu.memory_space<vmem>>, vector<4x256xf32>,
    %c1_i32 = arith.constant 1 : i32
    %17 = tpu.dynamic_rotate %1 by %c1_i32 dim 1 : vector<4x256xf32>, i32 -> vector<4x256xf32>
    %c3 = arith.constant 3 : index
    %c0_10 = arith.constant 0 : index
    %18 = vector.load %arg2[%c3, %c0_10] : memref<9x256xf32, #tpu.memory_space<vmem>>, vector<1x256xf32>
    %19 = vector.broadcast %18 : vector<1x256xf32> to vector<4x256xf32>
    %20 = arith.mulf %17, %19 : vector<4x256xf32>
    %c12 = arith.constant 12 : index
    %c0_11 = arith.constant 0 : index
    %21 = vector.load %arg13[%c12, %c0_11] : memref<36x256xf32, #tpu.memory_space<vmem>>, vector<4x256xf32>
    tpu.vector_store %arg13[%c12, %c0_11], %20 {strides = array<i32>} : memref<36x256xf32, #tpu.memory_space<vmem>>, vector<4x256xf32>,
    %c16 = arith.constant 16 : index
    %c0_12 = arith.constant 0 : index
    %22 = vector.load %arg13[%c16, %c0_12] : memref<36x256xf32, #tpu.memory_space<vmem>>, vector<4x256xf32>
    tpu.vector_store %arg13[%c16, %c0_12], %1 {strides = array<i32>} : memref<36x256xf32, #tpu.memory_space<vmem>>, vector<4x256xf32>,
    %c255_i32 = arith.constant 255 : i32
    %23 = tpu.dynamic_rotate %1 by %c255_i32 dim 1 : vector<4x256xf32>, i32 -> vector<4x256xf32>
    %c5 = arith.constant 5 : index
    %c0_13 = arith.constant 0 : index
    %24 = vector.load %arg2[%c5, %c0_13] : memref<9x256xf32, #tpu.memory_space<vmem>>, vector<1x256xf32>
    %25 = vector.broadcast %24 : vector<1x256xf32> to vector<4x256xf32>
    %26 = arith.mulf %23, %25 : vector<4x256xf32>
    %c20 = arith.constant 20 : index
    %c0_14 = arith.constant 0 : index
    %27 = vector.load %arg13[%c20, %c0_14] : memref<36x256xf32, #tpu.memory_space<vmem>>, vector<4x256xf32>
    tpu.vector_store %arg13[%c20, %c0_14], %26 {strides = array<i32>} : memref<36x256xf32, #tpu.memory_space<vmem>>, vector<4x256xf32>,
    %c241_i32 = arith.constant 241 : i32
    %28 = tpu.dynamic_rotate %1 by %c241_i32 dim 1 : vector<4x256xf32>, i32 -> vector<4x256xf32>
    %c6 = arith.constant 6 : index
    %c0_15 = arith.constant 0 : index
    %29 = vector.load %arg2[%c6, %c0_15] : memref<9x256xf32, #tpu.memory_space<vmem>>, vector<1x256xf32>
    %30 = vector.broadcast %29 : vector<1x256xf32> to vector<4x256xf32>
    %31 = arith.mulf %28, %30 : vector<4x256xf32>
    %c24 = arith.constant 24 : index
    %c0_16 = arith.constant 0 : index
    %32 = vector.load %arg13[%c24, %c0_16] : memref<36x256xf32, #tpu.memory_space<vmem>>, vector<4x256xf32>
    tpu.vector_store %arg13[%c24, %c0_16], %31 {strides = array<i32>} : memref<36x256xf32, #tpu.memory_space<vmem>>, vector<4x256xf32>,
    %c240_i32 = arith.constant 240 : i32
    %33 = tpu.dynamic_rotate %1 by %c240_i32 dim 1 : vector<4x256xf32>, i32 -> vector<4x256xf32>
    %c7 = arith.constant 7 : index
    %c0_17 = arith.constant 0 : index
    %34 = vector.load %arg2[%c7, %c0_17] : memref<9x256xf32, #tpu.memory_space<vmem>>, vector<1x256xf32>
    %35 = vector.broadcast %34 : vector<1x256xf32> to vector<4x256xf32>
    %36 = arith.mulf %33, %35 : vector<4x256xf32>
    %c28 = arith.constant 28 : index
    %c0_18 = arith.constant 0 : index
    %37 = vector.load %arg13[%c28, %c0_18] : memref<36x256xf32, #tpu.memory_space<vmem>>, vector<4x256xf32>
    tpu.vector_store %arg13[%c28, %c0_18], %36 {strides = array<i32>} : memref<36x256xf32, #tpu.memory_space<vmem>>, vector<4x256xf32>,
    %c239_i32 = arith.constant 239 : i32
    %38 = tpu.dynamic_rotate %1 by %c239_i32 dim 1 : vector<4x256xf32>, i32 -> vector<4x256xf32>
    %c8_19 = arith.constant 8 : index
    %c0_20 = arith.constant 0 : index
    %39 = vector.load %arg2[%c8_19, %c0_20] : memref<9x256xf32, #tpu.memory_space<vmem>>, vector<1x256xf32>
    %40 = vector.broadcast %39 : vector<1x256xf32> to vector<4x256xf32>
    %41 = arith.mulf %38, %40 : vector<4x256xf32>
    %c32 = arith.constant 32 : index
    %c0_21 = arith.constant 0 : index
    %42 = vector.load %arg13[%c32, %c0_21] : memref<36x256xf32, #tpu.memory_space<vmem>>, vector<4x256xf32>
    tpu.vector_store %arg13[%c32, %c0_21], %41 {strides = array<i32>} : memref<36x256xf32, #tpu.memory_space<vmem>>, vector<4x256xf32>,
    %c0_22 = arith.constant 0 : index
    %c0_23 = arith.constant 0 : index
    %43 = vector.load %arg13[%c0_22, %c0_23] : memref<36x256xf32, #tpu.memory_space<vmem>>, vector<36x256xf32>
    %c0_24 = arith.constant 0 : index
    %c0_25 = arith.constant 0 : index
    %44 = vector.load %arg3[%c0_24, %c0_25] : memref<4x36xf32, #tpu.memory_space<vmem>>, vector<4x36xf32>
    %cst = arith.constant dense<0.000000e+00> : vector<4x256xf32>
    %45 = tpu.matmul %44, %43, %cst {dimension_numbers = #tpu.dot_dimension_numbers<[1], [0], [0], [1], [0, 0, 1, 1], [], []>} : vector<4x36xf32>, vector<36x256xf32>, vector<4x256xf32> -> vector<4x256xf32>
    %c0_26 = arith.constant 0 : index
    %c0_27 = arith.constant 0 : index
    %46 = vector.load %arg4[%c0_26, %c0_27] : memref<4x1xf32, #tpu.memory_space<vmem>>, vector<4x1xf32>
    %47 = vector.broadcast %46 : vector<4x1xf32> to vector<4x256xf32>
    %48 = arith.addf %45, %47 : vector<4x256xf32>
    %cst_28 = arith.constant 0.000000e+00 : f32
    %49 = vector.broadcast %cst_28 : f32 to vector<4x256xf32>
    %50 = arith.maximumf %48, %49 : vector<4x256xf32>
    %51 = math.absf %48 : vector<4x256xf32>
    %52 = arith.subf %48, %51 : vector<4x256xf32>
    %cst_29 = arith.constant 5.000000e-01 : f32
    %53 = vector.broadcast %cst_29 : f32 to vector<4x256xf32>
    %54 = arith.mulf %53, %52 : vector<4x256xf32>
    %c0_30 = arith.constant 0 : index
    %c0_31 = arith.constant 0 : index
    %55 = vector.load %arg10[%c0_30, %c0_31] : memref<4x4xf32, #tpu.memory_space<vmem>>, vector<4x4xf32>
    %cst_32 = arith.constant dense<0.000000e+00> : vector<4x256xf32>
    %56 = tpu.matmul %55, %50, %cst_32 {dimension_numbers = #tpu.dot_dimension_numbers<[1], [0], [0], [1], [0, 0, 1, 1], [], []>} : vector<4x4xf32>, vector<4x256xf32>, vector<4x256xf32> -> vector<4x256xf32>
    %cst_33 = arith.constant dense<0.000000e+00> : vector<4xf32>
    %57 = vector.multi_reduction <add>, %54, %cst_33 [1] : vector<4x256xf32> to vector<4xf32>
    %58 = vector.shape_cast %57 : vector<4xf32> to vector<4x1xf32>
    %cst_34 = arith.constant 2.560000e+02 : f32
    %59 = vector.broadcast %cst_34 : f32 to vector<4x1xf32>
    %60 = arith.divf %58, %59 : vector<4x1xf32>
    %cst_35 = arith.constant dense<0.000000e+00> : vector<4xf32>
    %61 = vector.multi_reduction <add>, %50, %cst_35 [1] : vector<4x256xf32> to vector<4xf32>
    %62 = vector.shape_cast %61 : vector<4xf32> to vector<4x1xf32>
    %cst_36 = arith.constant 2.560000e+02 : f32
    %63 = vector.broadcast %cst_36 : f32 to vector<4x1xf32>
    %64 = arith.divf %62, %63 : vector<4x1xf32>
    %c0_37 = arith.constant 0 : index
    %c0_38 = arith.constant 0 : index
    %65 = vector.load %arg5[%c0_37, %c0_38] : memref<4x4xf32, #tpu.memory_space<vmem>>, vector<4x4xf32>
    %cst_39 = arith.constant dense<0.000000e+00> : vector<4x1xf32>
    %66 = tpu.matmul %65, %60, %cst_39 {dimension_numbers = #tpu.dot_dimension_numbers<[1], [0], [0], [1], [0, 0, 1, 1], [], []>} : vector<4x4xf32>, vector<4x1xf32>, vector<4x1xf32> -> vector<4x1xf32>
    %c0_40 = arith.constant 0 : index
    %c0_41 = arith.constant 0 : index
    %67 = vector.load %arg6[%c0_40, %c0_41] : memref<4x4xf32, #tpu.memory_space<vmem>>, vector<4x4xf32>
    %cst_42 = arith.constant dense<0.000000e+00> : vector<4x1xf32>
    %68 = tpu.matmul %67, %64, %cst_42 {dimension_numbers = #tpu.dot_dimension_numbers<[1], [0], [0], [1], [0, 0, 1, 1], [], []>} : vector<4x4xf32>, vector<4x1xf32>, vector<4x1xf32> -> vector<4x1xf32>
    %69 = arith.addf %66, %68 : vector<4x1xf32>
    %c0_43 = arith.constant 0 : index
    %c0_44 = arith.constant 0 : index
    %70 = vector.load %arg7[%c0_43, %c0_44] : memref<4x1xf32, #tpu.memory_space<vmem>>, vector<4x1xf32>
    %71 = arith.addf %69, %70 : vector<4x1xf32>
    %cst_45 = arith.constant 0.000000e+00 : f32
    %72 = vector.broadcast %cst_45 : f32 to vector<4x1xf32>
    %73 = arith.maximumf %71, %72 : vector<4x1xf32>
    %c0_46 = arith.constant 0 : index
    %c0_47 = arith.constant 0 : index
    %74 = vector.load %arg8[%c0_46, %c0_47] : memref<4x4xf32, #tpu.memory_space<vmem>>, vector<4x4xf32>
    %cst_48 = arith.constant dense<0.000000e+00> : vector<4x1xf32>
    %75 = tpu.matmul %74, %73, %cst_48 {dimension_numbers = #tpu.dot_dimension_numbers<[1], [0], [0], [1], [0, 0, 1, 1], [], []>} : vector<4x4xf32>, vector<4x1xf32>, vector<4x1xf32> -> vector<4x1xf32>
    %c0_49 = arith.constant 0 : index
    %c0_50 = arith.constant 0 : index
    %76 = vector.load %arg9[%c0_49, %c0_50] : memref<4x1xf32, #tpu.memory_space<vmem>>, vector<4x1xf32>
    %77 = arith.addf %75, %76 : vector<4x1xf32>
    %78 = arith.negf %77 : vector<4x1xf32>
    %79 = math.exp %78 : vector<4x1xf32>
    %cst_51 = arith.constant 1.000000e+00 : f32
    %80 = vector.broadcast %cst_51 : f32 to vector<4x1xf32>
    %81 = arith.addf %80, %79 : vector<4x1xf32>
    %82 = arith.divf %80, %81 : vector<4x1xf32>
    %83 = vector.broadcast %82 : vector<4x1xf32> to vector<4x256xf32>
    %84 = arith.mulf %83, %54 : vector<4x256xf32>
    %c0_52 = arith.constant 0 : index
    %c0_53 = arith.constant 0 : index
    %85 = vector.load %arg10[%c0_52, %c0_53] : memref<4x4xf32, #tpu.memory_space<vmem>>, vector<4x4xf32>
    %cst_54 = arith.constant dense<0.000000e+00> : vector<4x256xf32>
    %86 = tpu.matmul %85, %84, %cst_54 {dimension_numbers = #tpu.dot_dimension_numbers<[1], [0], [0], [1], [0, 0, 1, 1], [], []>} : vector<4x4xf32>, vector<4x256xf32>, vector<4x256xf32> -> vector<4x256xf32>
    %87 = arith.addf %56, %86 : vector<4x256xf32>
    %c0_55 = arith.constant 0 : index
    %c0_56 = arith.constant 0 : index
    %88 = vector.load %arg11[%c0_55, %c0_56] : memref<4x1xf32, #tpu.memory_space<vmem>>, vector<4x1xf32>
    %89 = vector.broadcast %88 : vector<4x1xf32> to vector<4x256xf32>
    %90 = arith.addf %87, %89 : vector<4x256xf32>
    %91 = arith.negf %90 : vector<4x256xf32>
    %92 = math.exp %91 : vector<4x256xf32>
    %cst_57 = arith.constant 1.000000e+00 : f32
    %93 = vector.broadcast %cst_57 : f32 to vector<4x256xf32>
    %94 = arith.addf %93, %92 : vector<4x256xf32>
    %95 = arith.divf %93, %94 : vector<4x256xf32>
    %96 = arith.mulf %1, %95 : vector<4x256xf32>
    %c0_58 = arith.constant 0 : index
    %c0_59 = arith.constant 0 : index
    %c0_60 = arith.constant 0 : index
    %97 = vector.load %arg12[%c0_58, %c0_59, %c0_60] : memref<1x4x256xf32, #tpu.memory_space<vmem>>, vector<1x4x256xf32>
    %98 = vector.shape_cast %97 : vector<1x4x256xf32> to vector<4x256xf32>
    %99 = vector.shape_cast %96 : vector<4x256xf32> to vector<1x4x256xf32>
    tpu.vector_store %arg12[%c0_58, %c0_59, %c0_60], %99 {strides = array<i32>} : memref<1x4x256xf32, #tpu.memory_space<vmem>>, vector<1x4x256xf32>,
    return
  }
  func.func @transform_0(%arg0: i32) -> (i32, i32, i32) {
    %c0_i32 = arith.constant 0 : i32
    %c0_i32_0 = arith.constant 0 : i32
    %c0_i32_1 = arith.constant 0 : i32
    return %arg0, %c0_i32, %c0_i32_0 : i32, i32, i32
  }
  func.func @transform_1(%arg0: i32) -> (i32, i32) {
    %c0_i32 = arith.constant 0 : i32
    %c0_i32_0 = arith.constant 0 : i32
    %c0_i32_1 = arith.constant 0 : i32
    return %c0_i32, %c0_i32_0 : i32, i32
  }
  func.func @transform_2(%arg0: i32) -> (i32, i32) {
    %c0_i32 = arith.constant 0 : i32
    %c0_i32_0 = arith.constant 0 : i32
    %c0_i32_1 = arith.constant 0 : i32
    return %c0_i32, %c0_i32_0 : i32, i32
  }
  func.func @transform_3(%arg0: i32) -> (i32, i32) {
    %c0_i32 = arith.constant 0 : i32
    %c0_i32_0 = arith.constant 0 : i32
    %c0_i32_1 = arith.constant 0 : i32
    return %c0_i32, %c0_i32_0 : i32, i32
  }
  func.func @transform_4(%arg0: i32) -> (i32, i32) {
    %c0_i32 = arith.constant 0 : i32
    %c0_i32_0 = arith.constant 0 : i32
    %c0_i32_1 = arith.constant 0 : i32
    return %c0_i32, %c0_i32_0 : i32, i32
  }
  func.func @transform_5(%arg0: i32) -> (i32, i32) {
    %c0_i32 = arith.constant 0 : i32
    %c0_i32_0 = arith.constant 0 : i32
    %c0_i32_1 = arith.constant 0 : i32
    return %c0_i32, %c0_i32_0 : i32, i32
  }
  func.func @transform_6(%arg0: i32) -> (i32, i32) {
    %c0_i32 = arith.constant 0 : i32
    %c0_i32_0 = arith.constant 0 : i32
    %c0_i32_1 = arith.constant 0 : i32
    return %c0_i32, %c0_i32_0 : i32, i32
  }
  func.func @transform_7(%arg0: i32) -> (i32, i32) {
    %c0_i32 = arith.constant 0 : i32
    %c0_i32_0 = arith.constant 0 : i32
    %c0_i32_1 = arith.constant 0 : i32
    return %c0_i32, %c0_i32_0 : i32, i32
  }
  func.func @transform_8(%arg0: i32) -> (i32, i32) {
    %c0_i32 = arith.constant 0 : i32
    %c0_i32_0 = arith.constant 0 : i32
    %c0_i32_1 = arith.constant 0 : i32
    return %c0_i32, %c0_i32_0 : i32, i32
  }
  func.func @transform_9(%arg0: i32) -> (i32, i32) {
    %c0_i32 = arith.constant 0 : i32
    %c0_i32_0 = arith.constant 0 : i32
    %c0_i32_1 = arith.constant 0 : i32
    return %c0_i32, %c0_i32_0 : i32, i32
  }
  func.func @transform_10(%arg0: i32) -> (i32, i32) {
    %c0_i32 = arith.constant 0 : i32
    %c0_i32_0 = arith.constant 0 : i32
    %c0_i32_1 = arith.constant 0 : i32
    return %c0_i32, %c0_i32_0 : i32, i32
  }
  func.func @transform_11(%arg0: i32) -> (i32, i32, i32) {
    %c0_i32 = arith.constant 0 : i32
    %c0_i32_0 = arith.constant 0 : i32
    %c0_i32_1 = arith.constant 0 : i32
    return %arg0, %c0_i32, %c0_i32_0 : i32, i32, i32
  }
}

</mosaic_0001>

<llo_original>
// kernel: tpu_custom_call.1
$region0: #{tpu_custom_call.1}
  #allocation0 [shape = 'u32[]', space=smem, size = 0x4, offset = 0x4, fixed_abs, tag = 'smem constant byte address 0x4 - core index']
  #allocation1 [shape = 'u32[144,128]{1,0:T(1,128)}', space=vmem, size = 0x12000, scoped, tag = 'internal scratch']
  #allocation2 [shape = 'f32[36,256]{1,0:T(8,128)}', space=vmem, size = 0xa000, scoped, tag = 'scratch operand']
  %s0 = inlined_call_operand.vmem [shape: f32[2,4,256], index: 0, kind: input, shape index: {}]
  %s1 = inlined_call_operand.hbm [shape: f32[9,256], index: 1, kind: input, shape index: {}]
  %s2 = inlined_call_operand.vmem [shape: f32[4,36], index: 2, kind: input, shape index: {}]
  %s3 = inlined_call_operand.vmem [shape: f32[4,1], index: 3, kind: input, shape index: {}]
  %s4 = inlined_call_operand.vmem [shape: f32[4,4], index: 4, kind: input, shape index: {}]
  %s5 = inlined_call_operand.vmem [shape: f32[4,4], index: 5, kind: input, shape index: {}]
  %s6 = inlined_call_operand.vmem [shape: f32[4,1], index: 6, kind: input, shape index: {}]
  %s7 = inlined_call_operand.vmem [shape: f32[4,4], index: 7, kind: input, shape index: {}]
  %s8 = inlined_call_operand.vmem [shape: f32[4,1], index: 8, kind: input, shape index: {}]
  %s9 = inlined_call_operand.vmem [shape: f32[4,4], index: 9, kind: input, shape index: {}]
  %s10 = inlined_call_operand.vmem [shape: f32[4,1], index: 10, kind: input, shape index: {}]
  %s11 = inlined_call_operand.hbm [shape: f32[2,4,256], index: 11, kind: output, shape index: {}]
  %s12 = sld [smem:[#allocation0]]
  $region81: #{tpu_custom_call.1} parent=0
    _
  %s14 = ssub.s32 1, %s12
  %s15 = scalar_select 0, %s14, %s12
  $region1: #{tpu_custom_call.1} parent=0
    #allocation3 [shape = 'u8[16384]{0}', space=vmem, size = 0x4000, scoped, tag = 'input window, operand 1, single buffered']
    #allocation4 [shape = 's32[2]{0}', space=sflag, size = 0x8, scoped, tag = 'scoped memory for tpu_custom_call.1']
    #allocation5 [shape = 's32[2]{0}', space=sflag, size = 0x8, scoped, tag = 'scoped memory for tpu_custom_call.1']
    #allocation6 [shape = 'u8[8192]{0}', space=vmem, size = 0x2000, scoped, tag = 'output window, operand 0']
    %16 = vsyncpa [#allocation4], 0
    %17 = vsyncpa [#allocation5], 0
    %s18 = scalar_lea.sflag [#allocation5], 1
    %19 = vsyncpa %s18, 0
    loop: start=0, step=1, limit=4
    $region2: #{tpu_custom_call.1} parent=1 // loop_pre_header
      _
    $region3: #{tpu_custom_call.1} parent=1 // loop_header
      %s21 = sphi 0, %s25
      %p22 = scmp.ge.s32.totalorder %s21, 4
      %s31 = sphi 0, %s33
      %s34 = sphi 0, %s31
      %s35 = sphi 0, %s34
      %s51 = sphi 0, %s35
      %s55 = sphi 0, %s55
      %s57 = sphi 0, %s55
      %s58 = sphi 0, %s57
      %s72 = sphi 0, %s58
      %s76 = sphi 0, %s76
      %s78 = sphi 0, %s76
      %s79 = sphi 0, %s78
      %s93 = sphi 0, %s79
      %s97 = sphi 0, %s97
      %s99 = sphi 0, %s97
      %s100 = sphi 0, %s99
      %s114 = sphi 0, %s100
      %s118 = sphi 0, %s118
      %s120 = sphi 0, %s118
      %s121 = sphi 0, %s120
      %s135 = sphi 0, %s121
      %s139 = sphi 0, %s139
      %s141 = sphi 0, %s139
      %s142 = sphi 0, %s141
      %s156 = sphi 0, %s142
      %s160 = sphi 0, %s160
      %s162 = sphi 0, %s160
      %s163 = sphi 0, %s162
      %s177 = sphi 0, %s163
      %s181 = sphi 0, %s181
      %s183 = sphi 0, %s181
      %s184 = sphi 0, %s183
      %s198 = sphi 0, %s184
      %s202 = sphi 0, %s202
      %s204 = sphi 0, %s202
      %s205 = sphi 0, %s204
      %s219 = sphi 0, %s205
      %s223 = sphi 0, %s223
      %s225 = sphi 0, %s223
      %s226 = sphi 0, %s225
      %s240 = sphi 0, %s226
      %s244 = sphi 0, %s244
      %s246 = sphi 0, %s244
      %s247 = sphi 0, %s246
      %s261 = sphi 0, %s247
      %s267 = sphi 0, %s269
      %s270 = sphi 0, %s267
      %s271 = sphi 0, %s270
      %s287 = sphi 0, %s271
    $region4: #{tpu_custom_call.1} parent=1 // loop_header_branch
      %24 = sbr.rel (%p22) target = $region8
    $region5: #{tpu_custom_call.1} parent=1 // loop_body
      %s26 = ssub.s32 %s21, 1
      %s27 = ssub.s32 %s21, 2
      %s28 = sadd.s32 %s21, 1
      %s29 = ssub.s32 %s21, %s28
      %p30 = scmp.eq.s32.totalorder %s29, 0
      %s32 = sadd.s32 %s31, 1
      %s33 = scalar_select %p30, %s31, %s32
      %p36 = pneg %p30
      %p37 = scmp.eq.s32.totalorder %s21, 1
      %p38 = por %p36, %p37
      %p39 = scmp.ne.s32.totalorder %s31, %s34
      %p40 = scmp.eq.s32.totalorder %s21, 0
      %p41 = por %p39, %p40
      %p42 = scmp.ne.s32.totalorder %s31, %s34
      %p43 = scmp.eq.s32.totalorder %s26, 1
      %p44 = por %p42, %p43
      %p45 = scmp.ne.s32.totalorder %s34, %s35
      %p46 = scmp.eq.s32.totalorder %s26, 0
      %p47 = por %p45, %p46
      %p48 = scmp.ne.s32.totalorder %s34, %s35
      %p49 = scmp.eq.s32.totalorder %s27, 1
      %p50 = por %p48, %p49
      %p52 = scmp.ne.s32.totalorder %s35, %s51
      %p53 = scmp.eq.s32.totalorder %s27, 0
      %p54 = por %p52, %p53
      %s56 = sadd.s32 %s55, 1
      %p59 = scmp.eq.s32.totalorder %s21, 1
      %p60 = scmp.ne.s32.totalorder %s55, %s57
      %p61 = scmp.eq.s32.totalorder %s21, 0
      %p62 = por %p60, %p61
      %p63 = scmp.ne.s32.totalorder %s55, %s57
      %p64 = scmp.eq.s32.totalorder %s26, 1
      %p65 = por %p63, %p64
      %p66 = scmp.ne.s32.totalorder %s57, %s58
      %p67 = scmp.eq.s32.totalorder %s26, 0
      %p68 = por %p66, %p67
      %p69 = scmp.ne.s32.totalorder %s57, %s58
      %p70 = scmp.eq.s32.totalorder %s27, 1
      %p71 = por %p69, %p70
      %p73 = scmp.ne.s32.totalorder %s58, %s72
      %p74 = scmp.eq.s32.totalorder %s27, 0
      %p75 = por %p73, %p74
      %s77 = sadd.s32 %s76, 1
      %p80 = scmp.eq.s32.totalorder %s21, 1
      %p81 = scmp.ne.s32.totalorder %s76, %s78
      %p82 = scmp.eq.s32.totalorder %s21, 0
      %p83 = por %p81, %p82
      %p84 = scmp.ne.s32.totalorder %s76, %s78
      %p85 = scmp.eq.s32.totalorder %s26, 1
      %p86 = por %p84, %p85
      %p87 = scmp.ne.s32.totalorder %s78, %s79
      %p88 = scmp.eq.s32.totalorder %s26, 0
      %p89 = por %p87, %p88
      %p90 = scmp.ne.s32.totalorder %s78, %s79
      %p91 = scmp.eq.s32.totalorder %s27, 1
      %p92 = por %p90, %p91
      %p94 = scmp.ne.s32.totalorder %s79, %s93
      %p95 = scmp.eq.s32.totalorder %s27, 0
      %p96 = por %p94, %p95
      %s98 = sadd.s32 %s97, 1
      %p101 = scmp.eq.s32.totalorder %s21, 1
      %p102 = scmp.ne.s32.totalorder %s97, %s99
      %p103 = scmp.eq.s32.totalorder %s21, 0
      %p104 = por %p102, %p103
      %p105 = scmp.ne.s32.totalorder %s97, %s99
      %p106 = scmp.eq.s32.totalorder %s26, 1
      %p107 = por %p105, %p106
      %p108 = scmp.ne.s32.totalorder %s99, %s100
      %p109 = scmp.eq.s32.totalorder %s26, 0
      %p110 = por %p108, %p109
      %p111 = scmp.ne.s32.totalorder %s99, %s100
      %p112 = scmp.eq.s32.totalorder %s27, 1
      %p113 = por %p111, %p112
      %p115 = scmp.ne.s32.totalorder %s100, %s114
      %p116 = scmp.eq.s32.totalorder %s27, 0
      %p117 = por %p115, %p116
      %s119 = sadd.s32 %s118, 1
      %p122 = scmp.eq.s32.totalorder %s21, 1
      %p123 = scmp.ne.s32.totalorder %s118, %s120
      %p124 = scmp.eq.s32.totalorder %s21, 0
      %p125 = por %p123, %p124
      %p126 = scmp.ne.s32.totalorder %s118, %s120
      %p127 = scmp.eq.s32.totalorder %s26, 1
      %p128 = por %p126, %p127
      %p129 = scmp.ne.s32.totalorder %s120, %s121
      %p130 = scmp.eq.s32.totalorder %s26, 0
      %p131 = por %p129, %p130
      %p132 = scmp.ne.s32.totalorder %s120, %s121
      %p133 = scmp.eq.s32.totalorder %s27, 1
      %p134 = por %p132, %p133
      %p136 = scmp.ne.s32.totalorder %s121, %s135
      %p137 = scmp.eq.s32.totalorder %s27, 0
      %p138 = por %p136, %p137
      %s140 = sadd.s32 %s139, 1
      %p143 = scmp.eq.s32.totalorder %s21, 1
      %p144 = scmp.ne.s32.totalorder %s139, %s141
      %p145 = scmp.eq.s32.totalorder %s21, 0
      %p146 = por %p144, %p145
      %p147 = scmp.ne.s32.totalorder %s139, %s141
      %p148 = scmp.eq.s32.totalorder %s26, 1
      %p149 = por %p147, %p148
      %p150 = scmp.ne.s32.totalorder %s141, %s142
      %p151 = scmp.eq.s32.totalorder %s26, 0
      %p152 = por %p150, %p151
      %p153 = scmp.ne.s32.totalorder %s141, %s142
      %p154 = scmp.eq.s32.totalorder %s27, 1
      %p155 = por %p153, %p154
      %p157 = scmp.ne.s32.totalorder %s142, %s156
      %p158 = scmp.eq.s32.totalorder %s27, 0
      %p159 = por %p157, %p158
      %s161 = sadd.s32 %s160, 1
      %p164 = scmp.eq.s32.totalorder %s21, 1
      %p165 = scmp.ne.s32.totalorder %s160, %s162
      %p166 = scmp.eq.s32.totalorder %s21, 0
      %p167 = por %p165, %p166
      %p168 = scmp.ne.s32.totalorder %s160, %s162
      %p169 = scmp.eq.s32.totalorder %s26, 1
      %p170 = por %p168, %p169
      %p171 = scmp.ne.s32.totalorder %s162, %s163
      %p172 = scmp.eq.s32.totalorder %s26, 0
      %p173 = por %p171, %p172
      %p174 = scmp.ne.s32.totalorder %s162, %s163
      %p175 = scmp.eq.s32.totalorder %s27, 1
      %p176 = por %p174, %p175
      %p178 = scmp.ne.s32.totalorder %s163, %s177
      %p179 = scmp.eq.s32.totalorder %s27, 0
      %p180 = por %p178, %p179
      %s182 = sadd.s32 %s181, 1
      %p185 = scmp.eq.s32.totalorder %s21, 1
      %p186 = scmp.ne.s32.totalorder %s181, %s183
      %p187 = scmp.eq.s32.totalorder %s21, 0
      %p188 = por %p186, %p187
      %p189 = scmp.ne.s32.totalorder %s181, %s183
      %p190 = scmp.eq.s32.totalorder %s26, 1
      %p191 = por %p189, %p190
      %p192 = scmp.ne.s32.totalorder %s183, %s184
      %p193 = scmp.eq.s32.totalorder %s26, 0
      %p194 = por %p192, %p193
      %p195 = scmp.ne.s32.totalorder %s183, %s184
      %p196 = scmp.eq.s32.totalorder %s27, 1
      %p197 = por %p195, %p196
      %p199 = scmp.ne.s32.totalorder %s184, %s198
      %p200 = scmp.eq.s32.totalorder %s27, 0
      %p201 = por %p199, %p200
      %s203 = sadd.s32 %s202, 1
      %p206 = scmp.eq.s32.totalorder %s21, 1
      %p207 = scmp.ne.s32.totalorder %s202, %s204
      %p208 = scmp.eq.s32.totalorder %s21, 0
      %p209 = por %p207, %p208
      %p210 = scmp.ne.s32.totalorder %s202, %s204
      %p211 = scmp.eq.s32.totalorder %s26, 1
      %p212 = por %p210, %p211
      %p213 = scmp.ne.s32.totalorder %s204, %s205
      %p214 = scmp.eq.s32.totalorder %s26, 0
      %p215 = por %p213, %p214
      %p216 = scmp.ne.s32.totalorder %s204, %s205
      %p217 = scmp.eq.s32.totalorder %s27, 1
      %p218 = por %p216, %p217
      %p220 = scmp.ne.s32.totalorder %s205, %s219
      %p221 = scmp.eq.s32.totalorder %s27, 0
      %p222 = por %p220, %p221
      %s224 = sadd.s32 %s223, 1
      %p227 = scmp.eq.s32.totalorder %s21, 1
      %p228 = scmp.ne.s32.totalorder %s223, %s225
      %p229 = scmp.eq.s32.totalorder %s21, 0
      %p230 = por %p228, %p229
      %p231 = scmp.ne.s32.totalorder %s223, %s225
      %p232 = scmp.eq.s32.totalorder %s26, 1
      %p233 = por %p231, %p232
      %p234 = scmp.ne.s32.totalorder %s225, %s226
      %p235 = scmp.eq.s32.totalorder %s26, 0
      %p236 = por %p234, %p235
      %p237 = scmp.ne.s32.totalorder %s225, %s226
      %p238 = scmp.eq.s32.totalorder %s27, 1
      %p239 = por %p237, %p238
      %p241 = scmp.ne.s32.totalorder %s226, %s240
      %p242 = scmp.eq.s32.totalorder %s27, 0
      %p243 = por %p241, %p242
      %s245 = sadd.s32 %s244, 1
      %p248 = scmp.eq.s32.totalorder %s21, 1
      %p249 = scmp.ne.s32.totalorder %s244, %s246
      %p250 = scmp.eq.s32.totalorder %s21, 0
      %p251 = por %p249, %p250
      %p252 = scmp.ne.s32.totalorder %s244, %s246
      %p253 = scmp.eq.s32.totalorder %s26, 1
      %p254 = por %p252, %p253
      %p255 = scmp.ne.s32.totalorder %s246, %s247
      %p256 = scmp.eq.s32.totalorder %s26, 0
      %p257 = por %p255, %p256
      %p258 = scmp.ne.s32.totalorder %s246, %s247
      %p259 = scmp.eq.s32.totalorder %s27, 1
      %p260 = por %p258, %p259
      %p262 = scmp.ne.s32.totalorder %s247, %s261
      %p263 = scmp.eq.s32.totalorder %s27, 0
      %p264 = por %p262, %p263
      %s265 = ssub.s32 %s21, %s28
      %p266 = scmp.eq.s32.totalorder %s265, 0
      %s268 = sadd.s32 %s267, 1
      %s269 = scalar_select %p266, %s267, %s268
      %p272 = pneg %p266
      %p273 = scmp.eq.s32.totalorder %s21, 1
      %p274 = por %p272, %p273
      %p275 = scmp.ne.s32.totalorder %s267, %s270
      %p276 = scmp.eq.s32.totalorder %s21, 0
      %p277 = por %p275, %p276
      %p278 = scmp.ne.s32.totalorder %s267, %s270
      %p279 = scmp.eq.s32.totalorder %s26, 1
      %p280 = por %p278, %p279
      %p281 = scmp.ne.s32.totalorder %s270, %s271
      %p282 = scmp.eq.s32.totalorder %s26, 0
      %p283 = por %p281, %p282
      %p284 = scmp.ne.s32.totalorder %s270, %s271
      %p285 = scmp.eq.s32.totalorder %s27, 1
      %p286 = por %p284, %p285
      %p288 = scmp.ne.s32.totalorder %s271, %s287
      %p289 = scmp.eq.s32.totalorder %s27, 0
      %p290 = por %p288, %p289
      %p291 = scmp.le.s32.totalorder 1, %s21
      %p292 = scmp.lt.s32.totalorder %s21, 3
      %p293 = pnand %p291, %p292
      %p294 = pneg %p293
      // Predicated region
      $region9: #{tpu_custom_call.1} parent=5 // pred_check
        _
      $region10: #{tpu_custom_call.1} parent=5 // pred_check_branch
        %296 = sbr.rel (%p293) target = $region12
      $region11: #{tpu_custom_call.1} parent=5 // pred_region
        %s297 = ssub.s32 %s21, 1
        // Predicated region
        $region13: #{tpu_custom_call.1} parent=11 // pred_check
          %p298 = pneg %p68
        $region14: #{tpu_custom_call.1} parent=11 // pred_check_branch
          %300 = sbr.rel (%p298) target = $region16
        $region15: #{tpu_custom_call.1} parent=11 // pred_region
          %s302 = ssub.s32 512, 512
          %303 = vsyncadd [#allocation4], %s302
          %s304 = sshll.u32 [#allocation3], 4
          %s305 = int_to_ptr.vmem [resolvable:$true] %s304
          %310 = dma.hbm_to_vmem [thread:$0]  %s1, 512, %s305, [#allocation4], 256, 256, 16
        $region16: #{tpu_custom_call.1} parent=11 // pred_fallthru
          _
        // Predicated region
        $region17: #{tpu_custom_call.1} parent=11 // pred_check
          %p311 = pneg %p89
        $region18: #{tpu_custom_call.1} parent=11 // pred_check_branch
          %313 = sbr.rel (%p311) target = $region20
        $region19: #{tpu_custom_call.1} parent=11 // pred_region
          _
        $region20: #{tpu_custom_call.1} parent=11 // pred_fallthru
          _
        // Predicated region
        $region21: #{tpu_custom_call.1} parent=11 // pred_check
          %p314 = pneg %p110
        $region22: #{tpu_custom_call.1} parent=11 // pred_check_branch
          %316 = sbr.rel (%p314) target = $region24
        $region23: #{tpu_custom_call.1} parent=11 // pred_region
          _
        $region24: #{tpu_custom_call.1} parent=11 // pred_fallthru
          _
        // Predicated region
        $region25: #{tpu_custom_call.1} parent=11 // pred_check
          %p317 = pneg %p131
        $region26: #{tpu_custom_call.1} parent=11 // pred_check_branch
          %319 = sbr.rel (%p317) target = $region28
        $region27: #{tpu_custom_call.1} parent=11 // pred_region
          _
        $region28: #{tpu_custom_call.1} parent=11 // pred_fallthru
          _
        // Predicated region
        $region29: #{tpu_custom_call.1} parent=11 // pred_check
          %p320 = pneg %p152
        $region30: #{tpu_custom_call.1} parent=11 // pred_check_branch
          %322 = sbr.rel (%p320) target = $region32
        $region31: #{tpu_custom_call.1} parent=11 // pred_region
          _
        $region32: #{tpu_custom_call.1} parent=11 // pred_fallthru
          _
        // Predicated region
        $region33: #{tpu_custom_call.1} parent=11 // pred_check
          %p323 = pneg %p173
        $region34: #{tpu_custom_call.1} parent=11 // pred_check_branch
          %325 = sbr.rel (%p323) target = $region36
        $region35: #{tpu_custom_call.1} parent=11 // pred_region
          _
        $region36: #{tpu_custom_call.1} parent=11 // pred_fallthru
          _
        // Predicated region
        $region37: #{tpu_custom_call.1} parent=11 // pred_check
          %p326 = pneg %p194
        $region38: #{tpu_custom_call.1} parent=11 // pred_check_branch
          %328 = sbr.rel (%p326) target = $region40
        $region39: #{tpu_custom_call.1} parent=11 // pred_region
          _
        $region40: #{tpu_custom_call.1} parent=11 // pred_fallthru
          _
        // Predicated region
        $region41: #{tpu_custom_call.1} parent=11 // pred_check
          %p329 = pneg %p215
        $region42: #{tpu_custom_call.1} parent=11 // pred_check_branch
          %331 = sbr.rel (%p329) target = $region44
        $region43: #{tpu_custom_call.1} parent=11 // pred_region
          _
        $region44: #{tpu_custom_call.1} parent=11 // pred_fallthru
          _
        // Predicated region
        $region45: #{tpu_custom_call.1} parent=11 // pred_check
          %p332 = pneg %p236
        $region46: #{tpu_custom_call.1} parent=11 // pred_check_branch
          %334 = sbr.rel (%p332) target = $region48
        $region47: #{tpu_custom_call.1} parent=11 // pred_region
          _
        $region48: #{tpu_custom_call.1} parent=11 // pred_fallthru
          _
        // Predicated region
        $region49: #{tpu_custom_call.1} parent=11 // pred_check
          %p335 = pneg %p257
        $region50: #{tpu_custom_call.1} parent=11 // pred_check_branch
          %337 = sbr.rel (%p335) target = $region52
        $region51: #{tpu_custom_call.1} parent=11 // pred_region
          _
        $region52: #{tpu_custom_call.1} parent=11 // pred_fallthru
          _
      $region12: #{tpu_custom_call.1} parent=5 // pred_fallthru
        _
      %p338 = scmp.lt.s32.totalorder %s21, 2
      // Predicated region
      $region53: #{tpu_custom_call.1} parent=5 // pred_check
        %p339 = pneg %p338
      $region54: #{tpu_custom_call.1} parent=5 // pred_check_branch
        %341 = sbr.rel (%p339) target = $region56
      $region55: #{tpu_custom_call.1} parent=5 // pred_region
        // Predicated region
        $region57: #{tpu_custom_call.1} parent=55 // pred_check
          %p342 = pneg %p41
        $region58: #{tpu_custom_call.1} parent=55 // pred_check_branch
          %344 = sbr.rel (%p342) target = $region60
        $region59: #{tpu_custom_call.1} parent=55 // pred_region
          %p345 = scmp.lt.s32.totalorder %s21, 1
          %s346 = scalar_select %p345, %s21, 1
          %s347 = smul.addr %s346, 2
          %s348 = smul.addr %s347, 4
          %s349 = scalar_lea.vmem %s0, %s348
        $region60: #{tpu_custom_call.1} parent=55 // pred_fallthru
          _
      $region56: #{tpu_custom_call.1} parent=5 // pred_fallthru
        _
      %p350 = scmp.le.s32.totalorder 1, %s21
      %p351 = scmp.lt.s32.totalorder %s21, 3
      %p352 = pnand %p350, %p351
      %p353 = pneg %p352
      // Predicated region
      $region61: #{tpu_custom_call.1} parent=5 // pred_check
        _
      $region62: #{tpu_custom_call.1} parent=5 // pred_check_branch
        %355 = sbr.rel (%p352) target = $region64
      $region63: #{tpu_custom_call.1} parent=5 // pred_region
        %s356 = ssub.s32 %s21, 1
        // Predicated region
        $region65: #{tpu_custom_call.1} parent=63 // pred_check
          %p357 = pneg %p68
        $region66: #{tpu_custom_call.1} parent=63 // pred_check_branch
          %359 = sbr.rel (%p357) target = $region68
        $region67: #{tpu_custom_call.1} parent=63 // pred_region
          %360 = dma.done [#allocation4], 512
        $region68: #{tpu_custom_call.1} parent=63 // pred_fallthru
          _
        %p361 = scmp.lt.s32.totalorder %s26, 1
        %s362 = scalar_select %p361, %s26, 1
        %s363 = smul.addr %s362, 2
        %s364 = smul.addr %s363, 4
        %s365 = scalar_lea.vmem %s0, %s364
        %p366 = pneg %p47
        %p367 = pneg %p44
        %p368 = pneg %p68
        %p369 = pneg %p65
        %p370 = pneg %p89
        %p371 = pneg %p86
        %p372 = pneg %p110
        %p373 = pneg %p107
        %p374 = pneg %p131
        %p375 = pneg %p128
        %p376 = pneg %p152
        %p377 = pneg %p149
        %p378 = pneg %p173
        %p379 = pneg %p170
        %p380 = pneg %p194
        %p381 = pneg %p191
        %p382 = pneg %p215
        %p383 = pneg %p212
        %p384 = pneg %p236
        %p385 = pneg %p233
        %p386 = pneg %p257
        %p387 = pneg %p254
        %p388 = pneg %p283
        %p389 = pneg %p280
        %s390 = sand.u32 %s270, 1
        %s391 = scalar_lea.sflag [#allocation5], %s390
        %s392 = sand.u32 %s270, 1
        %s393 = smul.addr %s392, 8
        %s394 = scalar_lea.vmem [#allocation6], %s393
        %p395 = scmp.lt.s32.totalorder %s26, 1
        %s396 = scalar_select %p395, %s26, 1
        %s397 = smul.addr %s396, 2
        %s398 = smul.addr %s397, 4
        %s399 = scalar_lea.vmem %s0, %s398
        %v400 = vld [vmem:[%s399] sm:$0xff]
        %v402 = vcombine.high %v400, %v400
        %404 = vrot.lane.b32.xlu0 %v400, 17
        %v405 = vpop.permute.xlu0 %404
        %406 = vrot.lane.b32.xlu0 %v402, 17
        %v407 = vpop.permute.xlu0 %406
        %v408 = vlaneseq
        %v409 = vand.u32 %v408, 127
        %vm410 = vcmp.lt.s32.totalorder %v409, 17
        %v411 = vsel %vm410, %v405, %v407
        %v412 = vsel %vm410, %v407, %v405
        %v413 = vld [vmem:[#allocation3] ss:$8 sm:$0x3]
        %v415 = vlaneseq
        %v416 = vshrl.u32 %v415, 7
        %v417 = vsub.s32 0, %v416
        %v418 = vrot.slane %v413, %v417
        %v419 = vlaneseq
        %v420 = vshrl.u32 %v419, 7
        %v421 = vsub.s32 1, %v420
        %v422 = vrot.slane %v413, %v421
        %v425 = vmul.f32 %v412, %v418
        %v426 = vmul.f32 %v411, %v422
        %427 = vst [vmem:[#allocation2] sm:$0xf] %v425
        %428 = vst [vmem:[#allocation2 + $0x8] sm:$0xf] %v426
        %429 = vrot.lane.b32.xlu0 %v400, 16
        %v430 = vpop.permute.xlu0 %429
        %431 = vrot.lane.b32.xlu0 %v402, 16
        %v432 = vpop.permute.xlu0 %431
        %vm433 = vcmp.lt.s32.totalorder %v409, 16
        %v434 = vsel %vm433, %v430, %v432
        %v435 = vsel %vm433, %v432, %v430
        %s436 = scalar_lea.vmem [#allocation3], 1
        %v437 = vld [vmem:[%s436] ss:$8 sm:$0x3]
        %v439 = vlaneseq
        %v440 = vshrl.u32 %v439, 7
        %v441 = vsub.s32 0, %v440
        %v442 = vrot.slane %v437, %v441
        %v443 = vlaneseq
        %v444 = vshrl.u32 %v443, 7
        %v445 = vsub.s32 1, %v444
        %v446 = vrot.slane %v437, %v445
        %v449 = vmul.f32 %v435, %v442
        %v450 = vmul.f32 %v434, %v446
        %v453 = vrot.slane %v449, 4
        %v454 = vrot.slane %v450, 4
        %457 = vst [vmem:[#allocation2] sm:$0xf0] %v453
        %458 = vst [vmem:[#allocation2 + $0x8] sm:$0xf0] %v454
        %459 = vrot.lane.b32.xlu0 %v400, 15
        %v460 = vpop.permute.xlu0 %459
        %461 = vrot.lane.b32.xlu0 %v402, 15
        %v462 = vpop.permute.xlu0 %461
        %vm463 = vcmp.lt.s32.totalorder %v409, 15
        %v464 = vsel %vm463, %v460, %v462
        %v465 = vsel %vm463, %v462, %v460
        %s466 = scalar_lea.vmem [#allocation3], 2
        %v467 = vld [vmem:[%s466] ss:$8 sm:$0x3]
        %v469 = vlaneseq
        %v470 = vshrl.u32 %v469, 7
        %v471 = vsub.s32 0, %v470
        %v472 = vrot.slane %v467, %v471
        %v473 = vlaneseq
        %v474 = vshrl.u32 %v473, 7
        %v475 = vsub.s32 1, %v474
        %v476 = vrot.slane %v467, %v475
        %v479 = vmul.f32 %v465, %v472
        %v480 = vmul.f32 %v464, %v476
        %481 = vst [vmem:[#allocation2 + $0x10] sm:$0xf] %v479
        %482 = vst [vmem:[#allocation2 + $0x18] sm:$0xf] %v480
        %483 = vrot.lane.b32.xlu0 %v400, 1
        %v484 = vpop.permute.xlu0 %483
        %485 = vrot.lane.b32.xlu0 %v402, 1
        %v486 = vpop.permute.xlu0 %485
        %vm487 = vcmp.lt.s32.totalorder %v409, 1
        %v488 = vsel %vm487, %v484, %v486
        %v489 = vsel %vm487, %v486, %v484
        %s490 = scalar_lea.vmem [#allocation3], 3
        %v491 = vld [vmem:[%s490] ss:$8 sm:$0x3]
        %v493 = vlaneseq
        %v494 = vshrl.u32 %v493, 7
        %v495 = vsub.s32 0, %v494
        %v496 = vrot.slane %v491, %v495
        %v497 = vlaneseq
        %v498 = vshrl.u32 %v497, 7
        %v499 = vsub.s32 1, %v498
        %v500 = vrot.slane %v491, %v499
        %v503 = vmul.f32 %v489, %v496
        %v504 = vmul.f32 %v488, %v500
        %v507 = vrot.slane %v503, 4
        %v508 = vrot.slane %v504, 4
        %511 = vst [vmem:[#allocation2 + $0x10] sm:$0xf0] %v507
        %512 = vst [vmem:[#allocation2 + $0x18] sm:$0xf0] %v508
        %513 = vst [vmem:[#allocation2 + $0x20] sm:$0xf] %v400
        %514 = vst [vmem:[#allocation2 + $0x28] sm:$0xf] %v402
        %515 = vrot.lane.b32.xlu0 %v400, 127
        %v516 = vpop.permute.xlu0 %515
        %517 = vrot.lane.b32.xlu0 %v402, 127
        %v518 = vpop.permute.xlu0 %517
        %vm519 = vcmp.lt.s32.totalorder %v409, 127
        %v520 = vsel %vm519, %v516, %v518
        %v521 = vsel %vm519, %v518, %v516
        %s522 = scalar_lea.vmem [#allocation3], 5
        %v523 = vld [vmem:[%s522] ss:$8 sm:$0x3]
        %v525 = vlaneseq
        %v526 = vshrl.u32 %v525, 7
        %v527 = vsub.s32 0, %v526
        %v528 = vrot.slane %v523, %v527
        %v529 = vlaneseq
        %v530 = vshrl.u32 %v529, 7
        %v531 = vsub.s32 1, %v530
        %v532 = vrot.slane %v523, %v531
        %v535 = vmul.f32 %v520, %v528
        %v536 = vmul.f32 %v521, %v532
        %v539 = vrot.slane %v535, 4
        %v540 = vrot.slane %v536, 4
        %543 = vst [vmem:[#allocation2 + $0x20] sm:$0xf0] %v539
        %544 = vst [vmem:[#allocation2 + $0x28] sm:$0xf0] %v540
        %545 = vrot.lane.b32.xlu0 %v400, 113
        %v546 = vpop.permute.xlu0 %545
        %547 = vrot.lane.b32.xlu0 %v402, 113
        %v548 = vpop.permute.xlu0 %547
        %vm549 = vcmp.lt.s32.totalorder %v409, 113
        %v550 = vsel %vm549, %v546, %v548
        %v551 = vsel %vm549, %v548, %v546
        %s552 = scalar_lea.vmem [#allocation3], 6
        %v553 = vld [vmem:[%s552] ss:$8 sm:$0x3]
        %v555 = vlaneseq
        %v556 = vshrl.u32 %v555, 7
        %v557 = vsub.s32 0, %v556
        %v558 = vrot.slane %v553, %v557
        %v559 = vlaneseq
        %v560 = vshrl.u32 %v559, 7
        %v561 = vsub.s32 1, %v560
        %v562 = vrot.slane %v553, %v561
        %v565 = vmul.f32 %v550, %v558
        %v566 = vmul.f32 %v551, %v562
        %567 = vst [vmem:[#allocation2 + $0x30] sm:$0xf] %v565
        %568 = vst [vmem:[#allocation2 + $0x38] sm:$0xf] %v566
        %569 = vrot.lane.b32.xlu0 %v400, 112
        %v570 = vpop.permute.xlu0 %569
        %571 = vrot.lane.b32.xlu0 %v402, 112
        %v572 = vpop.permute.xlu0 %571
        %vm573 = vcmp.lt.s32.totalorder %v409, 112
        %v574 = vsel %vm573, %v570, %v572
        %v575 = vsel %vm573, %v572, %v570
        %s576 = scalar_lea.vmem [#allocation3], 7
        %v577 = vld [vmem:[%s576] ss:$8 sm:$0x3]
        %v579 = vlaneseq
        %v580 = vshrl.u32 %v579, 7
        %v581 = vsub.s32 0, %v580
        %v582 = vrot.slane %v577, %v581
        %v583 = vlaneseq
        %v584 = vshrl.u32 %v583, 7
        %v585 = vsub.s32 1, %v584
        %v586 = vrot.slane %v577, %v585
        %v589 = vmul.f32 %v574, %v582
        %v590 = vmul.f32 %v575, %v586
        %v593 = vrot.slane %v589, 4
        %v594 = vrot.slane %v590, 4
        %597 = vst [vmem:[#allocation2 + $0x30] sm:$0xf0] %v593
        %598 = vst [vmem:[#allocation2 + $0x38] sm:$0xf0] %v594
        %599 = vrot.lane.b32.xlu0 %v400, 111
        %v600 = vpop.permute.xlu0 %599
        %601 = vrot.lane.b32.xlu0 %v402, 111
        %v602 = vpop.permute.xlu0 %601
        %vm603 = vcmp.lt.s32.totalorder %v409, 111
        %v604 = vsel %vm603, %v600, %v602
        %v605 = vsel %vm603, %v602, %v600
        %s606 = scalar_lea.vmem [#allocation3], 16
        %v607 = vld [vmem:[%s606] ss:$8 sm:$0x3]
        %v609 = vlaneseq
        %v610 = vshrl.u32 %v609, 7
        %v611 = vsub.s32 0, %v610
        %v612 = vrot.slane %v607, %v611
        %v613 = vlaneseq
        %v614 = vshrl.u32 %v613, 7
        %v615 = vsub.s32 1, %v614
        %v616 = vrot.slane %v607, %v615
        %v619 = vmul.f32 %v604, %v612
        %v620 = vmul.f32 %v605, %v616
        %621 = vst [vmem:[#allocation2 + $0x40] sm:$0xf] %v619
        %622 = vst [vmem:[#allocation2 + $0x48] sm:$0xf] %v620
        %v623 = vld [vmem:[#allocation2] sm:$0xff]
        %v624 = vld [vmem:[#allocation2 + $0x8] sm:$0xff]
        %v625 = vld [vmem:[#allocation2 + $0x10] sm:$0xff]
        %v626 = vld [vmem:[#allocation2 + $0x18] sm:$0xff]
        %v627 = vld [vmem:[#allocation2 + $0x20] sm:$0xff]
        %v628 = vld [vmem:[#allocation2 + $0x28] sm:$0xff]
        %v629 = vld [vmem:[#allocation2 + $0x30] sm:$0xff]
        %v630 = vld [vmem:[#allocation2 + $0x38] sm:$0xff]
        %v631 = vld [vmem:[#allocation2 + $0x40] sm:$0xf]
        %v632 = vld [vmem:[#allocation2 + $0x48] sm:$0xf]
        %v633 = vld [vmem:[%s2] sm:$0xf]
        %v634 = vld [vmem:[%s3] sm:$0xf]
        %636 = vset.pattern.permute.xlu0 0
        %637 = vperm.xlu0 %636, %v634
        %v638 = vpop.permute.xlu0 %637
        %vm640 = vcmask 293888
        %v642 = vsel %vm640, %v633, 0
        %vm644 = vcmask 1043456
        %v646 = vsel %vm644, %v631, 0
        %v649 = vsel %vm644, %v632, 0
        %651 = vmatprep.subr.mxu0 0.0
        %652 = vmatpush1.msra.mxu0 0.0
        %653 = vmatprep.subr.mxu0 0.0
        %654 = vmatpush1.msra.mxu0 0.0
        %655 = vmatprep.subr.mxu0 0.0
        %656 = vmatpush1.msra.mxu0 0.0
        %657 = vmatprep.subr.mxu0 0.0
        %658 = vmatpush1.msra.mxu0 0.0
        %659 = vmatprep.subr.mxu0 0.0
        %660 = vmatpush1.msra.mxu0 0.0
        %661 = vmatprep.subr.mxu0 0.0
        %662 = vmatpush1.msra.mxu0 0.0
        %663 = vmatprep.subr.mxu0 0.0
        %664 = vmatpush1.msra.mxu0 0.0
        %665 = vmatprep.subr.mxu0 0.0
        %666 = vmatpush1.msra.mxu0 0.0
        %667 = vmatprep.subr.mxu0 0.0
        %668 = vmatpush1.msra.mxu0 0.0
        %669 = vmatprep.subr.mxu0 0.0
        %670 = vmatpush1.msra.mxu0 0.0
        %671 = vmatprep.subr.mxu0 0.0
        %672 = vmatpush1.msra.mxu0 0.0
        %673 = vmatprep.subr.mxu0 %v649
        %674 = vmatpush1.msra.mxu0 %v646
        %675 = vmatprep.subr.mxu0 %v630
        %676 = vmatpush1.msra.mxu0 %v629
        %677 = vmatprep.subr.mxu0 %v628
        %678 = vmatpush1.msra.mxu0 %v627
        %679 = vmatprep.subr.mxu0 %v626
        %680 = vmatpush1.msra.mxu0 %v625
        %681 = vmatprep.subr.mxu0 %v624
        %682 = vmatpush1.msra.mxu0 %v623
        %683 = vmatprep.subr.mxu0 0.0
        %684 = vmatpush2.msra.mxu0 0.0
        %685 = vmatprep.subr.mxu0 0.0
        %686 = vmatpush2.msra.mxu0 0.0
        %687 = vmatprep.subr.mxu0 0.0
        %688 = vmatpush2.msra.mxu0 0.0
        %689 = vmatprep.subr.mxu0 0.0
        %690 = vmatpush2.msra.mxu0 0.0
        %691 = vmatprep.subr.mxu0 0.0
        %692 = vmatpush2.msra.mxu0 0.0
        %693 = vmatprep.subr.mxu0 0.0
        %694 = vmatpush2.msra.mxu0 0.0
        %695 = vmatprep.subr.mxu0 0.0
        %696 = vmatpush2.msra.mxu0 0.0
        %697 = vmatprep.subr.mxu0 0.0
        %698 = vmatpush2.msra.mxu0 0.0
        %699 = vmatprep.subr.mxu0 0.0
        %700 = vmatpush2.msra.mxu0 0.0
        %701 = vmatprep.subr.mxu0 0.0
        %702 = vmatpush2.msra.mxu0 0.0
        %703 = vmatprep.subr.mxu0 0.0
        %704 = vmatpush2.msra.mxu0 0.0
        %705 = vmatprep.subr.mxu0 0.0
        %706 = vmatpush2.msra.mxu0 0.0
        %707 = vmatprep.subr.mxu0 0.0
        %708 = vmatpush2.msra.mxu0 0.0
        %709 = vmatprep.subr.mxu0 0.0
        %710 = vmatpush2.msra.mxu0 0.0
        %711 = vmatprep.subr.mxu0 0.0
        %712 = vmatpush2.msra.mxu0 0.0
        %713 = vmatprep.subr.mxu0 0.0
        %714 = vmatpush2.msra.mxu0 0.0
        %715 = vmatprep.mubr.f32.mxu0 0.0
        %716 = vmatmul.mubr.f32.gmra.mxu0 %v642
        %v717 = vpop.f32.mrf.mxu0
        %v718 = vadd.f32 %v638, %v717
        %v719 = vpop.f32.mrf.mxu0
        %v720 = vadd.f32 %v638, %v719
        %721 = vdwg.mxu0
        %v722 = vmax.f32 %v718, 0.0
        %v723 = vmax.f32 %v720, 0.0
        %v724 = vand.u32 2147483647, %v718
        %v725 = vand.u32 2147483647, %v720
        %v726 = vsub.f32 %v718, %v724
        %v727 = vsub.f32 %v720, %v725
        %v728 = vmul.f32 %v726, 0.5
        %v729 = vmul.f32 %v727, 0.5
        %v730 = vld [vmem:[%s9] sm:$0xf]
        %v731 = vsel %vm644, %v728, 0.0
        %v732 = vsel %vm644, %v729, 0.0
        %v733 = vadd.f32 %v731, %v732
        %734 = vadd.xlane.f32.xlu0 %v733
        %v735 = vpop.xlane.xlu0 %734
        %v736 = vrcp.pop 256.0
        %v737 = vmul.f32 %v735, %v736
        %v738 = vsel %vm644, %v722, 0.0
        %v739 = vsel %vm644, %v723, 0.0
        %v740 = vadd.f32 %v738, %v739
        %741 = vadd.xlane.f32.xlu0 %v740
        %v742 = vpop.xlane.xlu0 %741
        %v743 = vmul.f32 %v742, %v736
        %v744 = vld [vmem:[%s4] sm:$0xf]
        %v745 = vld [vmem:[%s5] sm:$0xf]
        %vm746 = vcmask 31744
        %v748 = vsel %vm746, %v745, 0
        %v751 = vsel %vm644, %v743, 0
        %753 = vmatprep.subr.mxu0 0.0
        %754 = vmatpush1.msra.mxu0 0.0
        %755 = vmatprep.subr.mxu0 0.0
        %756 = vmatpush1.msra.mxu0 0.0
        %757 = vmatprep.subr.mxu0 0.0
        %758 = vmatpush1.msra.mxu0 0.0
        %759 = vmatprep.subr.mxu0 0.0
        %760 = vmatpush1.msra.mxu0 0.0
        %761 = vmatprep.subr.mxu0 0.0
        %762 = vmatpush1.msra.mxu0 0.0
        %763 = vmatprep.subr.mxu0 0.0
        %764 = vmatpush1.msra.mxu0 0.0
        %765 = vmatprep.subr.mxu0 0.0
        %766 = vmatpush1.msra.mxu0 0.0
        %767 = vmatprep.subr.mxu0 0.0
        %768 = vmatpush1.msra.mxu0 0.0
        %769 = vmatprep.subr.mxu0 0.0
        %770 = vmatpush1.msra.mxu0 0.0
        %771 = vmatprep.subr.mxu0 0.0
        %772 = vmatpush1.msra.mxu0 0.0
        %773 = vmatprep.subr.mxu0 0.0
        %774 = vmatpush1.msra.mxu0 0.0
        %775 = vmatprep.subr.mxu0 0.0
        %776 = vmatpush1.msra.mxu0 0.0
        %777 = vmatprep.subr.mxu0 0.0
        %778 = vmatpush1.msra.mxu0 0.0
        %779 = vmatprep.subr.mxu0 0.0
        %780 = vmatpush1.msra.mxu0 0.0
        %781 = vmatprep.subr.mxu0 0.0
        %782 = vmatpush1.msra.mxu0 0.0
        %783 = vmatprep.subr.mxu0 0.0
        %784 = vmatpush1.msra.mxu0 %v751
        %785 = vmatprep.subr.mxu0 0.0
        %786 = vmatpush2.msra.mxu0 0.0
        %787 = vmatprep.subr.mxu0 0.0
        %788 = vmatpush2.msra.mxu0 0.0
        %789 = vmatprep.subr.mxu0 0.0
        %790 = vmatpush2.msra.mxu0 0.0
        %791 = vmatprep.subr.mxu0 0.0
        %792 = vmatpush2.msra.mxu0 0.0
        %793 = vmatprep.subr.mxu0 0.0
        %794 = vmatpush2.msra.mxu0 0.0
        %795 = vmatprep.subr.mxu0 0.0
        %796 = vmatpush2.msra.mxu0 0.0
        %797 = vmatprep.subr.mxu0 0.0
        %798 = vmatpush2.msra.mxu0 0.0
        %799 = vmatprep.subr.mxu0 0.0
        %800 = vmatpush2.msra.mxu0 0.0
        %801 = vmatprep.subr.mxu0 0.0
        %802 = vmatpush2.msra.mxu0 0.0
        %803 = vmatprep.subr.mxu0 0.0
        %804 = vmatpush2.msra.mxu0 0.0
        %805 = vmatprep.subr.mxu0 0.0
        %806 = vmatpush2.msra.mxu0 0.0
        %807 = vmatprep.subr.mxu0 0.0
        %808 = vmatpush2.msra.mxu0 0.0
        %809 = vmatprep.subr.mxu0 0.0
        %810 = vmatpush2.msra.mxu0 0.0
        %811 = vmatprep.subr.mxu0 0.0
        %812 = vmatpush2.msra.mxu0 0.0
        %813 = vmatprep.subr.mxu0 0.0
        %814 = vmatpush2.msra.mxu0 0.0
        %815 = vmatprep.subr.mxu0 0.0
        %816 = vmatpush2.msra.mxu0 0.0
        %817 = vmatprep.mubr.f32.mxu0 0.0
        %818 = vmatmul.mubr.f32.gmra.mxu0 %v748
        %v819 = vpop.f32.mrf.mxu0
        %v820 = vadd.f32 0.0, %v819
        %v821 = vpop.f32.mrf.mxu0
        %822 = vdwg.mxu0
        %v824 = vsel %vm746, %v744, 0
        %v827 = vsel %vm644, %v737, 0
        %829 = vmatprep.subr.mxu0 0.0
        %830 = vmatpush1.msra.mxu0 0.0
        %831 = vmatprep.subr.mxu0 0.0
        %832 = vmatpush1.msra.mxu0 0.0
        %833 = vmatprep.subr.mxu0 0.0
        %834 = vmatpush1.msra.mxu0 0.0
        %835 = vmatprep.subr.mxu0 0.0
        %836 = vmatpush1.msra.mxu0 0.0
        %837 = vmatprep.subr.mxu0 0.0
        %838 = vmatpush1.msra.mxu0 0.0
        %839 = vmatprep.subr.mxu0 0.0
        %840 = vmatpush1.msra.mxu0 0.0
        %841 = vmatprep.subr.mxu0 0.0
        %842 = vmatpush1.msra.mxu0 0.0
        %843 = vmatprep.subr.mxu0 0.0
        %844 = vmatpush1.msra.mxu0 0.0
        %845 = vmatprep.subr.mxu0 0.0
        %846 = vmatpush1.msra.mxu0 0.0
        %847 = vmatprep.subr.mxu0 0.0
        %848 = vmatpush1.msra.mxu0 0.0
        %849 = vmatprep.subr.mxu0 0.0
        %850 = vmatpush1.msra.mxu0 0.0
        %851 = vmatprep.subr.mxu0 0.0
        %852 = vmatpush1.msra.mxu0 0.0
        %853 = vmatprep.subr.mxu0 0.0
        %854 = vmatpush1.msra.mxu0 0.0
        %855 = vmatprep.subr.mxu0 0.0
        %856 = vmatpush1.msra.mxu0 0.0
        %857 = vmatprep.subr.mxu0 0.0
        %858 = vmatpush1.msra.mxu0 0.0
        %859 = vmatprep.subr.mxu0 0.0
        %860 = vmatpush1.msra.mxu0 %v827
        %861 = vmatprep.subr.mxu0 0.0
        %862 = vmatpush2.msra.mxu0 0.0
        %863 = vmatprep.subr.mxu0 0.0
        %864 = vmatpush2.msra.mxu0 0.0
        %865 = vmatprep.subr.mxu0 0.0
        %866 = vmatpush2.msra.mxu0 0.0
        %867 = vmatprep.subr.mxu0 0.0
        %868 = vmatpush2.msra.mxu0 0.0
        %869 = vmatprep.subr.mxu0 0.0
        %870 = vmatpush2.msra.mxu0 0.0
        %871 = vmatprep.subr.mxu0 0.0
        %872 = vmatpush2.msra.mxu0 0.0
        %873 = vmatprep.subr.mxu0 0.0
        %874 = vmatpush2.msra.mxu0 0.0
        %875 = vmatprep.subr.mxu0 0.0
        %876 = vmatpush2.msra.mxu0 0.0
        %877 = vmatprep.subr.mxu0 0.0
        %878 = vmatpush2.msra.mxu0 0.0
        %879 = vmatprep.subr.mxu0 0.0
        %880 = vmatpush2.msra.mxu0 0.0
        %881 = vmatprep.subr.mxu0 0.0
        %882 = vmatpush2.msra.mxu0 0.0
        %883 = vmatprep.subr.mxu0 0.0
        %884 = vmatpush2.msra.mxu0 0.0
        %885 = vmatprep.subr.mxu0 0.0
        %886 = vmatpush2.msra.mxu0 0.0
        %887 = vmatprep.subr.mxu0 0.0
        %888 = vmatpush2.msra.mxu0 0.0
        %889 = vmatprep.subr.mxu0 0.0
        %890 = vmatpush2.msra.mxu0 0.0
        %891 = vmatprep.subr.mxu0 0.0
        %892 = vmatpush2.msra.mxu0 0.0
        %893 = vmatprep.mubr.f32.mxu0 0.0
        %894 = vmatmul.mubr.f32.gmra.mxu0 %v824
        %v895 = vpop.f32.mrf.mxu0
        %v896 = vadd.f32 %v820, %v895
        %v897 = vpop.f32.mrf.mxu0
        %898 = vdwg.mxu0
        %v899 = vld [vmem:[%s6] sm:$0xf]
        %v900 = vadd.f32 %v896, %v899
        %v901 = vmax.f32 %v900, 0.0
        %v902 = vld [vmem:[%s7] sm:$0xf]
        %v903 = vld [vmem:[%s8] sm:$0xf]
        %v905 = vsel %vm746, %v902, 0
        %v908 = vsel %vm644, %v901, 0
        %910 = vmatprep.subr.mxu0 0.0
        %911 = vmatpush1.msra.mxu0 0.0
        %912 = vmatprep.subr.mxu0 0.0
        %913 = vmatpush1.msra.mxu0 0.0
        %914 = vmatprep.subr.mxu0 0.0
        %915 = vmatpush1.msra.mxu0 0.0
        %916 = vmatprep.subr.mxu0 0.0
        %917 = vmatpush1.msra.mxu0 0.0
        %918 = vmatprep.subr.mxu0 0.0
        %919 = vmatpush1.msra.mxu0 0.0
        %920 = vmatprep.subr.mxu0 0.0
        %921 = vmatpush1.msra.mxu0 0.0
        %922 = vmatprep.subr.mxu0 0.0
        %923 = vmatpush1.msra.mxu0 0.0
        %924 = vmatprep.subr.mxu0 0.0
        %925 = vmatpush1.msra.mxu0 0.0
        %926 = vmatprep.subr.mxu0 0.0
        %927 = vmatpush1.msra.mxu0 0.0
        %928 = vmatprep.subr.mxu0 0.0
        %929 = vmatpush1.msra.mxu0 0.0
        %930 = vmatprep.subr.mxu0 0.0
        %931 = vmatpush1.msra.mxu0 0.0
        %932 = vmatprep.subr.mxu0 0.0
        %933 = vmatpush1.msra.mxu0 0.0
        %934 = vmatprep.subr.mxu0 0.0
        %935 = vmatpush1.msra.mxu0 0.0
        %936 = vmatprep.subr.mxu0 0.0
        %937 = vmatpush1.msra.mxu0 0.0
        %938 = vmatprep.subr.mxu0 0.0
        %939 = vmatpush1.msra.mxu0 0.0
        %940 = vmatprep.subr.mxu0 0.0
        %941 = vmatpush1.msra.mxu0 %v908
        %942 = vmatprep.subr.mxu0 0.0
        %943 = vmatpush2.msra.mxu0 0.0
        %944 = vmatprep.subr.mxu0 0.0
        %945 = vmatpush2.msra.mxu0 0.0
        %946 = vmatprep.subr.mxu0 0.0
        %947 = vmatpush2.msra.mxu0 0.0
        %948 = vmatprep.subr.mxu0 0.0
        %949 = vmatpush2.msra.mxu0 0.0
        %950 = vmatprep.subr.mxu0 0.0
        %951 = vmatpush2.msra.mxu0 0.0
        %952 = vmatprep.subr.mxu0 0.0
        %953 = vmatpush2.msra.mxu0 0.0
        %954 = vmatprep.subr.mxu0 0.0
        %955 = vmatpush2.msra.mxu0 0.0
        %956 = vmatprep.subr.mxu0 0.0
        %957 = vmatpush2.msra.mxu0 0.0
        %958 = vmatprep.subr.mxu0 0.0
        %959 = vmatpush2.msra.mxu0 0.0
        %960 = vmatprep.subr.mxu0 0.0
        %961 = vmatpush2.msra.mxu0 0.0
        %962 = vmatprep.subr.mxu0 0.0
        %963 = vmatpush2.msra.mxu0 0.0
        %964 = vmatprep.subr.mxu0 0.0
        %965 = vmatpush2.msra.mxu0 0.0
        %966 = vmatprep.subr.mxu0 0.0
        %967 = vmatpush2.msra.mxu0 0.0
        %968 = vmatprep.subr.mxu0 0.0
        %969 = vmatpush2.msra.mxu0 0.0
        %970 = vmatprep.subr.mxu0 0.0
        %971 = vmatpush2.msra.mxu0 0.0
        %972 = vmatprep.subr.mxu0 0.0
        %973 = vmatpush2.msra.mxu0 0.0
        %974 = vmatprep.mubr.f32.mxu0 0.0
        %975 = vmatmul.mubr.f32.gmra.mxu0 %v905
        %v976 = vpop.f32.mrf.mxu0
        %v977 = vadd.f32 %v903, %v976
        %v978 = vpop.f32.mrf.mxu0
        %979 = vdwg.mxu0
        %v980 = vxor.u32 %v977, 2147483648
        %v981 = vmul.f32 %v980, 1.442695
        %v982 = vpow.pop %v981
        %v983 = vadd.f32 %v982, 1.0
        %v984 = vrcp.pop %v983
        %v985 = vmul.f32 1.0, %v984
        %987 = vset.pattern.permute.xlu0 0
        %988 = vperm.xlu0 %987, %v985
        %v989 = vpop.permute.xlu0 %988
        %v991 = vmul.f32 %v989, %v728
        %v992 = vmul.f32 %v989, %v729
        %v994 = vsel %vm746, %v730, 0
        %v997 = vsel %vm644, %v991, 0
        %v1000 = vsel %vm644, %v992, 0
        %1002 = vmatprep.subr.mxu0 0.0
        %1003 = vmatpush1.msra.mxu0 0.0
        %1004 = vmatprep.subr.mxu0 0.0
        %1005 = vmatpush1.msra.mxu0 0.0
        %1006 = vmatprep.subr.mxu0 0.0
        %1007 = vmatpush1.msra.mxu0 0.0
        %1008 = vmatprep.subr.mxu0 0.0
        %1009 = vmatpush1.msra.mxu0 0.0
        %1010 = vmatprep.subr.mxu0 0.0
        %1011 = vmatpush1.msra.mxu0 0.0
        %1012 = vmatprep.subr.mxu0 0.0
        %1013 = vmatpush1.msra.mxu0 0.0
        %1014 = vmatprep.subr.mxu0 0.0
        %1015 = vmatpush1.msra.mxu0 0.0
        %1016 = vmatprep.subr.mxu0 0.0
        %1017 = vmatpush1.msra.mxu0 0.0
        %1018 = vmatprep.subr.mxu0 0.0
        %1019 = vmatpush1.msra.mxu0 0.0
        %1020 = vmatprep.subr.mxu0 0.0
        %1021 = vmatpush1.msra.mxu0 0.0
        %1022 = vmatprep.subr.mxu0 0.0
        %1023 = vmatpush1.msra.mxu0 0.0
        %1024 = vmatprep.subr.mxu0 0.0
        %1025 = vmatpush1.msra.mxu0 0.0
        %1026 = vmatprep.subr.mxu0 0.0
        %1027 = vmatpush1.msra.mxu0 0.0
        %1028 = vmatprep.subr.mxu0 0.0
        %1029 = vmatpush1.msra.mxu0 0.0
        %1030 = vmatprep.subr.mxu0 0.0
        %1031 = vmatpush1.msra.mxu0 0.0
        %1032 = vmatprep.subr.mxu0 %v1000
        %1033 = vmatpush1.msra.mxu0 %v997
        %1034 = vmatprep.subr.mxu0 0.0
        %1035 = vmatpush2.msra.mxu0 0.0
        %1036 = vmatprep.subr.mxu0 0.0
        %1037 = vmatpush2.msra.mxu0 0.0
        %1038 = vmatprep.subr.mxu0 0.0
        %1039 = vmatpush2.msra.mxu0 0.0
        %1040 = vmatprep.subr.mxu0 0.0
        %1041 = vmatpush2.msra.mxu0 0.0
        %1042 = vmatprep.subr.mxu0 0.0
        %1043 = vmatpush2.msra.mxu0 0.0
        %1044 = vmatprep.subr.mxu0 0.0
        %1045 = vmatpush2.msra.mxu0 0.0
        %1046 = vmatprep.subr.mxu0 0.0
        %1047 = vmatpush2.msra.mxu0 0.0
        %1048 = vmatprep.subr.mxu0 0.0
        %1049 = vmatpush2.msra.mxu0 0.0
        %1050 = vmatprep.subr.mxu0 0.0
        %1051 = vmatpush2.msra.mxu0 0.0
        %1052 = vmatprep.subr.mxu0 0.0
        %1053 = vmatpush2.msra.mxu0 0.0
        %1054 = vmatprep.subr.mxu0 0.0
        %1055 = vmatpush2.msra.mxu0 0.0
        %1056 = vmatprep.subr.mxu0 0.0
        %1057 = vmatpush2.msra.mxu0 0.0
        %1058 = vmatprep.subr.mxu0 0.0
        %1059 = vmatpush2.msra.mxu0 0.0
        %1060 = vmatprep.subr.mxu0 0.0
        %1061 = vmatpush2.msra.mxu0 0.0
        %1062 = vmatprep.subr.mxu0 0.0
        %1063 = vmatpush2.msra.mxu0 0.0
        %1064 = vmatprep.subr.mxu0 0.0
        %1065 = vmatpush2.msra.mxu0 0.0
        %1066 = vmatprep.mubr.f32.mxu0 0.0
        %1067 = vmatmul.mubr.f32.gmra.mxu0 %v994
        %v1068 = vpop.f32.mrf.mxu0
        %v1069 = vadd.f32 0.0, %v1068
        %v1070 = vpop.f32.mrf.mxu0
        %v1071 = vadd.f32 0.0, %v1070
        %1072 = vdwg.mxu0
        %v1074 = vsel %vm644, %v722, 0
        %v1077 = vsel %vm644, %v723, 0
        %1079 = vmatprep.subr.mxu0 0.0
        %1080 = vmatpush1.msra.mxu0 0.0
        %1081 = vmatprep.subr.mxu0 0.0
        %1082 = vmatpush1.msra.mxu0 0.0
        %1083 = vmatprep.subr.mxu0 0.0
        %1084 = vmatpush1.msra.mxu0 0.0
        %1085 = vmatprep.subr.mxu0 0.0
        %1086 = vmatpush1.msra.mxu0 0.0
        %1087 = vmatprep.subr.mxu0 0.0
        %1088 = vmatpush1.msra.mxu0 0.0
        %1089 = vmatprep.subr.mxu0 0.0
        %1090 = vmatpush1.msra.mxu0 0.0
        %1091 = vmatprep.subr.mxu0 0.0
        %1092 = vmatpush1.msra.mxu0 0.0
        %1093 = vmatprep.subr.mxu0 0.0
        %1094 = vmatpush1.msra.mxu0 0.0
        %1095 = vmatprep.subr.mxu0 0.0
        %1096 = vmatpush1.msra.mxu0 0.0
        %1097 = vmatprep.subr.mxu0 0.0
        %1098 = vmatpush1.msra.mxu0 0.0
        %1099 = vmatprep.subr.mxu0 0.0
        %1100 = vmatpush1.msra.mxu0 0.0
        %1101 = vmatprep.subr.mxu0 0.0
        %1102 = vmatpush1.msra.mxu0 0.0
        %1103 = vmatprep.subr.mxu0 0.0
        %1104 = vmatpush1.msra.mxu0 0.0
        %1105 = vmatprep.subr.mxu0 0.0
        %1106 = vmatpush1.msra.mxu0 0.0
        %1107 = vmatprep.subr.mxu0 0.0
        %1108 = vmatpush1.msra.mxu0 0.0
        %1109 = vmatprep.subr.mxu0 %v1077
        %1110 = vmatpush1.msra.mxu0 %v1074
        %1111 = vmatprep.subr.mxu0 0.0
        %1112 = vmatpush2.msra.mxu0 0.0
        %1113 = vmatprep.subr.mxu0 0.0
        %1114 = vmatpush2.msra.mxu0 0.0
        %1115 = vmatprep.subr.mxu0 0.0
        %1116 = vmatpush2.msra.mxu0 0.0
        %1117 = vmatprep.subr.mxu0 0.0
        %1118 = vmatpush2.msra.mxu0 0.0
        %1119 = vmatprep.subr.mxu0 0.0
        %1120 = vmatpush2.msra.mxu0 0.0
        %1121 = vmatprep.subr.mxu0 0.0
        %1122 = vmatpush2.msra.mxu0 0.0
        %1123 = vmatprep.subr.mxu0 0.0
        %1124 = vmatpush2.msra.mxu0 0.0
        %1125 = vmatprep.subr.mxu0 0.0
        %1126 = vmatpush2.msra.mxu0 0.0
        %1127 = vmatprep.subr.mxu0 0.0
        %1128 = vmatpush2.msra.mxu0 0.0
        %1129 = vmatprep.subr.mxu0 0.0
        %1130 = vmatpush2.msra.mxu0 0.0
        %1131 = vmatprep.subr.mxu0 0.0
        %1132 = vmatpush2.msra.mxu0 0.0
        %1133 = vmatprep.subr.mxu0 0.0
        %1134 = vmatpush2.msra.mxu0 0.0
        %1135 = vmatprep.subr.mxu0 0.0
        %1136 = vmatpush2.msra.mxu0 0.0
        %1137 = vmatprep.subr.mxu0 0.0
        %1138 = vmatpush2.msra.mxu0 0.0
        %1139 = vmatprep.subr.mxu0 0.0
        %1140 = vmatpush2.msra.mxu0 0.0
        %1141 = vmatprep.subr.mxu0 0.0
        %1142 = vmatpush2.msra.mxu0 0.0
        %1143 = vmatprep.mubr.f32.mxu0 0.0
        %1144 = vmatmul.mubr.f32.gmra.mxu0 %v994
        %v1145 = vpop.f32.mrf.mxu0
        %v1146 = vadd.f32 %v1069, %v1145
        %v1147 = vpop.f32.mrf.mxu0
        %v1148 = vadd.f32 %v1071, %v1147
        %1149 = vdwg.mxu0
        %v1150 = vld [vmem:[%s10] sm:$0xf]
        %1152 = vset.pattern.permute.xlu0 0
        %1153 = vperm.xlu0 %1152, %v1150
        %v1154 = vpop.permute.xlu0 %1153
        %v1156 = vadd.f32 %v1146, %v1154
        %v1157 = vadd.f32 %v1148, %v1154
        %v1158 = vxor.u32 %v1156, 2147483648
        %v1159 = vxor.u32 %v1157, 2147483648
        %v1160 = vmul.f32 %v1158, 1.442695
        %v1161 = vpow.pop %v1160
        %v1162 = vmul.f32 %v1159, 1.442695
        %v1163 = vpow.pop %v1162
        %v1164 = vadd.f32 %v1161, 1.0
        %v1165 = vadd.f32 %v1163, 1.0
        %v1166 = vrcp.pop %v1164
        %v1167 = vmul.f32 1.0, %v1166
        %v1168 = vrcp.pop %v1165
        %v1169 = vmul.f32 1.0, %v1168
        %v1172 = vcombine.low %v1167, %v1169
        %v1174 = vmul.f32 %v400, %v1172
        %1175 = vst [vmem:[%s394] sm:$0xff] %v1174
        %s1176 = sand.u32 %s270, 1
        %s1177 = scalar_lea.sflag [#allocation5], %s1176
        %s1178 = sand.u32 %s270, 1
        %s1179 = smul.addr %s1178, 8
        %s1180 = scalar_lea.vmem [#allocation6], %s1179
        // Predicated region
        $region69: #{tpu_custom_call.1} parent=63 // pred_check
          %p1181 = pneg %p280
        $region70: #{tpu_custom_call.1} parent=63 // pred_check_branch
          %1183 = sbr.rel (%p1181) target = $region72
        $region71: #{tpu_custom_call.1} parent=63 // pred_region
          %s1185 = ssub.s32 128, 128
          %1186 = vsyncadd %s1177, %s1185
          %s1187 = smul.addr %s26, 2
          %s1188 = smul.addr %s1187, 64
          %s1189 = scalar_lea.hbm %s11, %s1188
          %s1191 = sshll.u32 %s1180, 4
          %s1192 = int_to_ptr.vmem [resolvable:$true] %s1191
          %1194 = dma.vmem_to_hbm [thread:$0]  %s1192, 128, %s1189, %s1177
        $region72: #{tpu_custom_call.1} parent=63 // pred_fallthru
          _
      $region64: #{tpu_custom_call.1} parent=5 // pred_fallthru
        _
      %p1195 = scmp.le.s32.totalorder 2, %s21
      // Predicated region
      $region73: #{tpu_custom_call.1} parent=5 // pred_check
        %p1196 = pneg %p1195
      $region74: #{tpu_custom_call.1} parent=5 // pred_check_branch
        %1198 = sbr.rel (%p1196) target = $region76
      $region75: #{tpu_custom_call.1} parent=5 // pred_region
        %s1199 = ssub.s32 %s21, 2
        // Predicated region
        $region77: #{tpu_custom_call.1} parent=75 // pred_check
          %p1200 = pneg %p286
        $region78: #{tpu_custom_call.1} parent=75 // pred_check_branch
          %1202 = sbr.rel (%p1200) target = $region80
        $region79: #{tpu_custom_call.1} parent=75 // pred_region
          %s1203 = sand.u32 %s271, 1
          %s1204 = scalar_lea.sflag [#allocation5], %s1203
          %s1205 = sand.u32 %s271, 1
          %s1206 = smul.addr %s1205, 8
          %s1207 = scalar_lea.vmem [#allocation6], %s1206
          %1208 = dma.done %s1204, 128
        $region80: #{tpu_custom_call.1} parent=75 // pred_fallthru
          _
      $region76: #{tpu_custom_call.1} parent=5 // pred_fallthru
        _
    $region6: #{tpu_custom_call.1} parent=1 // loop_footer
      %s25 = sadd.s32 1, %s21
    $region7: #{tpu_custom_call.1} parent=1 // loop_footer_branch
      %20 = sbr.rel target = $region3
    $region8: #{tpu_custom_call.1} parent=1 // loop_exit
      _
    %1209 = vsyncpa [#allocation4], 1
    %s1210 = scalar_lea.sflag [#allocation4], 1
    %1211 = vsyncpa %s1210, 1
    %1212 = vsyncpa [#allocation5], 1
    %s1213 = scalar_lea.sflag [#allocation5], 1
    %1214 = vsyncpa %s1213, 1

</llo_original>
